<compile_context>
chip_gen: v7x
topology: tpu7x:2x2x1
jax: 0.10.0
libtpu: 0.0.40
codegen_flags: <defaults>
</compile_context>

<pallas_src>
import jax
import jax.numpy as jnp
from jax import lax
from jax.experimental import pallas as pl
from jax.experimental.pallas import tpu as pltpu

NEG_SLOPE = 0.01   # nn.LeakyReLU default negative_slope
BN_EPS = 1e-5      # nn.BatchNorm2d default eps


def _round_up(x, m):
    return ((x + m - 1) // m) * m


def _make_down_kernel(H2, W2, concat1, concat2):
    M = H2 * W2
    off0 = _round_up(W2 + 1, 8)          # sublane-aligned halo size

    def kernel(x_ref, w1_ref, b1_ref, w2_ref, b2_ref, out_ref, p1_ref, p2_ref):
        # x_ref : (M, 4*Cin)   rows=(h2,w2), lanes=(hs,ws,cin)
        # w*_ref: (9*C, C')    im2col weights, BN scale folded in, bf16
        # b*_ref: (1, C')      folded BN bias, f32
        # out   : (M, Cout)
        # p*_ref: (M + 2*off0, C) flat row-padded f32 scratch (zero halo)
        Cin = x_ref.shape[1] // 4

        # Column-edge predicates: only the dx=+-1 taps can wrap across a row,
        # and their validity depends on the column index alone.
        col = lax.broadcasted_iota(jnp.int32, (M, 1), 0) % W2
        not_l = col > 0             # (h, w-1) stays inside the same row
        not_r = col < (W2 - 1)      # (h, w+1) stays inside the same row

        x = x_ref[...].astype(jnp.float32)
        # 2x2 max-pool: the four window elements are packed along the lane dim.
        xp = jnp.maximum(jnp.maximum(x[:, 0:Cin], x[:, Cin:2 * Cin]),
                         jnp.maximum(x[:, 2 * Cin:3 * Cin], x[:, 3 * Cin:4 * Cin]))

        def conv_bn_act(p_ref, val, w_ref, b_ref, use_concat):
            C = p_ref.shape[1]
            # Halo rows must be zero (they feed the dy out-of-bounds taps); the
            # interior is fully rewritten every grid step.  Re-zeroed each step
            # because with "parallel" semantics a core may never run step 0.
            p_ref[0:off0, :] = jnp.zeros((off0, C), jnp.float32)
            p_ref[off0 + M:2 * off0 + M, :] = jnp.zeros((off0, C), jnp.float32)
            p_ref[off0:off0 + M, :] = val

            taps = []
            for dy in (-1, 0, 1):
                for dx in (-1, 0, 1):
                    st = off0 + dy * W2 + dx
                    t = p_ref[st:st + M, :]
                    if dx == -1:
                        t = jnp.where(not_l, t, 0.0)
                    elif dx == 1:
                        t = jnp.where(not_r, t, 0.0)
                    taps.append(t)

            if use_concat:
                # Small C: one im2col matmul, contraction depth 9*C fills the MXU.
                patches = jnp.concatenate(taps, axis=-1).astype(jnp.bfloat16)
                y = jnp.dot(patches, w_ref[...],
                            preferred_element_type=jnp.float32)
            else:
                # C >= 128: skip the (M, 9C) concat copy; accumulate 9 matmuls
                # straight from the shifted scratch views.
                y = jnp.zeros((M, w_ref.shape[1]), jnp.float32)
                for k in range(9):
                    y = y + jnp.dot(taps[k].astype(jnp.bfloat16),
                                    w_ref[k * C:(k + 1) * C, :],
                                    preferred_element_type=jnp.float32)

            y = y + b_ref[...]                          # folded BN bias (eval)
            return jnp.where(y > 0, y, NEG_SLOPE * y)   # LeakyReLU; Dropout2d=id

        y1 = conv_bn_act(p1_ref, xp, w1_ref, b1_ref, concat1)   # (M, Cmid)
        y2 = conv_bn_act(p2_ref, y1, w2_ref, b2_ref, concat2)   # (M, Cout)
        out_ref[...] = y2.astype(out_ref.dtype)

    return kernel, off0


def down_forward_packed(xp, w1f, b1, w2f, b2, H2, W2):
    """Transpose-free core.  xp: (N, H2*W2, 4*Cin) lane-packed pooling windows
    (lanes = (hs, ws, cin)).  Returns (N, H2*W2, Cout) = NHWC flattened."""
    N, M, lanes = xp.shape
    assert M == H2 * W2 and lanes % 4 == 0
    Cin = lanes // 4
    Cmid = w1f.shape[1]
    Cout = w2f.shape[1]
    assert w1f.shape[0] == 9 * Cin and w2f.shape[0] == 9 * Cmid

    concat1 = Cin < 128        # small contraction depth -> im2col concat form
    concat2 = Cmid < 128
    kernel, off0 = _make_down_kernel(H2, W2, concat1, concat2)

    # Resident-set estimate -> scoped VMEM limit (defaults: 16 MiB v5e / 32 MiB v6e).
    slab = M + 2 * off0
    est = (2 * M * lanes * 4                               # x block (double-buffered)
           + 2 * M * Cout * 4                              # out block (double-buffered)
           + 2 * (9 * Cin * Cmid + 9 * Cmid * Cout) * 2    # bf16 weights
           + slab * (Cin + Cmid) * 4                       # halo scratch
           + M * 9 * (Cin + Cmid) * 4                      # patch temporaries
           + M * (Cmid + Cout) * 8)                        # activations / headroom
    vmem_limit = int(min(64 * 1024 * 1024, max(16 * 1024 * 1024, 2 * est)))

    return pl.pallas_call(
        kernel,
        out_shape=jax.ShapeDtypeStruct((N, M, Cout), xp.dtype),
        grid_spec=pltpu.PrefetchScalarGridSpec(
            num_scalar_prefetch=0,
            grid=(N,),
            in_specs=[
                pl.BlockSpec((None, M, lanes), lambda n: (n, 0, 0)),
                pl.BlockSpec((9 * Cin, Cmid), lambda n: (0, 0)),
                pl.BlockSpec((1, Cmid), lambda n: (0, 0)),
                pl.BlockSpec((9 * Cmid, Cout), lambda n: (0, 0)),
                pl.BlockSpec((1, Cout), lambda n: (0, 0)),
            ],
            out_specs=pl.BlockSpec((None, M, Cout), lambda n: (n, 0, 0)),
            scratch_shapes=[
                pltpu.VMEM((slab, Cin), jnp.float32),
                pltpu.VMEM((slab, Cmid), jnp.float32),
            ],
        ),
        compiler_params=pltpu.CompilerParams(
            dimension_semantics=("parallel",),
            vmem_limit_bytes=vmem_limit,
        ),
    )(xp, w1f, b1, w2f, b2)


def fold_bn_into_conv(w_hwio, gamma, beta, running_mean, running_var, eps=BN_EPS):
    """Fold eval-mode BatchNorm into the preceding conv (host-side, one-time).
    Returns (im2col weight (9*Ci, Co) bf16 with the BN scale folded in,
             bias (1, Co) f32)."""
    scale = gamma / jnp.sqrt(running_var + eps)
    bias = beta - running_mean * scale
    kh, kw, ci, co = w_hwio.shape
    wf = (w_hwio.reshape(kh * kw * ci, co) * scale[None, :]).astype(jnp.bfloat16)
    return wf, bias.reshape(1, co).astype(jnp.float32)


def down_forward(x_nchw, w1f, b1, w2f, b2):
    """NCHW wrapper matching the PyTorch module interface.
    NOTE: the two transposes here are wrapper-side layout plumbing only; chain
    consecutive Down blocks through down_forward_packed()/NHWC to avoid them."""
    N, Cin, H, W = x_nchw.shape
    assert H % 2 == 0 and W % 2 == 0
    H2, W2 = H // 2, W // 2
    Cout = w2f.shape[1]
    x = x_nchw.reshape(N, Cin, H2, 2, W2, 2)
    x = jnp.transpose(x, (0, 2, 4, 3, 5, 1)).reshape(N, H2 * W2, 4 * Cin)
    out = down_forward_packed(x, w1f, b1, w2f, b2, H2, W2)
    return jnp.transpose(out.reshape(N, H2, W2, Cout), (0, 3, 1, 2))


def ref_forward(x_nchw, w1, g1, be1, rm1, rv1, w2, g2, be2, rm2, rv2):
    """Pure-JAX f32 reference (eval-mode Down) for a sanity check."""
    def bn(y, g, b, m, v):
        s = g / jnp.sqrt(v + BN_EPS)
        return y * s + (b - m * s)
    x = jnp.transpose(x_nchw, (0, 2, 3, 1))
    xp = lax.reduce_window(x, -jnp.inf, lax.max, (1, 2, 2, 1), (1, 2, 2, 1), 'VALID')
    dn = ('NHWC', 'HWIO', 'NHWC')
    y = lax.conv_general_dilated(xp, w1, (1, 1), 'SAME', dimension_numbers=dn)
    y = bn(y, g1, be1, rm1, rv1)
    y = jnp.where(y > 0, y, NEG_SLOPE * y)
    y = lax.conv_general_dilated(y, w2, (1, 1), 'SAME', dimension_numbers=dn)
    y = bn(y, g2, be2, rm2, rv2)
    y = jnp.where(y > 0, y, NEG_SLOPE * y)
    return jnp.transpose(y, (0, 3, 1, 2))


if __name__ == "__main__":
    key = jax.random.PRNGKey(0)
    keys = jax.random.split(key, 11)

    N, Cin, H, W = 2, 4, 16, 16
    Cmid = Cout = 8

    # Conv weights, HWIO layout (== transposed PyTorch OIHW), deterministic.
    w1 = 0.1 * jax.random.normal(keys[0], (3, 3, Cin, Cmid), jnp.float32)
    w2 = 0.1 * jax.random.normal(keys[1], (3, 3, Cmid, Cout), jnp.float32)

    # BatchNorm parameters / running stats (eval mode), deterministic.
    g1 = 1.0 + 0.1 * jax.random.normal(keys[2], (Cmid,), jnp.float32)
    be1 = 0.1 * jax.random.normal(keys[3], (Cmid,), jnp.float32)
    rm1 = 0.05 * jax.random.normal(keys[4], (Cmid,), jnp.float32)
    rv1 = 1.0 + 0.1 * jnp.abs(jax.random.normal(keys[5], (Cmid,), jnp.float32))
    g2 = 1.0 + 0.1 * jax.random.normal(keys[6], (Cout,), jnp.float32)
    be2 = 0.1 * jax.random.normal(keys[7], (Cout,), jnp.float32)
    rm2 = 0.05 * jax.random.normal(keys[8], (Cout,), jnp.float32)
    rv2 = 1.0 + 0.1 * jnp.abs(jax.random.normal(keys[9], (Cout,), jnp.float32))

    x = jax.random.normal(keys[10], (N, Cin, H, W), jnp.float32)

    # Host-side, one-time: fold BN scale into bf16 im2col weights.
    w1f, b1 = fold_bn_into_conv(w1, g1, be1, rm1, rv1)
    w2f, b2 = fold_bn_into_conv(w2, g2, be2, rm2, rv2)

    out = jax.jit(down_forward)(x, w1f, b1, w2f, b2)
    out = jax.block_until_ready(out)

    ref = jax.block_until_ready(
        ref_forward(x, w1, g1, be1, rm1, rv1, w2, g2, be2, rm2, rv2))
    assert out.shape == (N, Cout, H // 2, W // 2)
    max_err = float(jnp.max(jnp.abs(out - ref)))
    assert jnp.allclose(out, ref, rtol=2e-2, atol=2e-2), max_err

    print("KERNEL_OK")
</pallas_src>

<mosaic_0001>
module attributes {stable_mosaic.version = 11 : i64} {
  func.func @kernel(%arg0: i32, %arg1: memref<1x64x16xf32, #tpu.memory_space<vmem>>, %arg2: memref<36x8xbf16, #tpu.memory_space<vmem>>, %arg3: memref<1x8xf32, #tpu.memory_space<vmem>>, %arg4: memref<72x8xbf16, #tpu.memory_space<vmem>>, %arg5: memref<1x8xf32, #tpu.memory_space<vmem>>, %arg6: memref<1x64x8xf32, #tpu.memory_space<vmem>>, %arg7: memref<96x4xf32, #tpu.memory_space<vmem>>, %arg8: memref<96x8xf32, #tpu.memory_space<vmem>>) attributes {dimension_semantics = [#tpu.dimension_semantics<parallel>], iteration_bounds = array<i64: 2>, scalar_prefetch = 0 : i64, scratch_operands = 2 : i64, tpu.core_type = #tpu.core_type<tc>, window_params = [{transform_indices = @transform_0, window_bounds = array<i64: 1, 64, 16>}, {pipeline_mode = #tpu.pipeline_mode<synchronous>, transform_indices = @transform_1, window_bounds = array<i64: 36, 8>}, {pipeline_mode = #tpu.pipeline_mode<synchronous>, transform_indices = @transform_2, window_bounds = array<i64: 1, 8>}, {pipeline_mode = #tpu.pipeline_mode<synchronous>, transform_indices = @transform_3, window_bounds = array<i64: 72, 8>}, {pipeline_mode = #tpu.pipeline_mode<synchronous>, transform_indices = @transform_4, window_bounds = array<i64: 1, 8>}, {transform_indices = @transform_5, window_bounds = array<i64: 1, 64, 8>}]} {
    %0 = tpu.iota {dimensions = array<i32: 0>} : vector<64x1xi32>
    %c8_i32 = arith.constant 8 : i32
    %c0_i32 = arith.constant 0 : i32
    %1 = arith.cmpi eq, %c8_i32, %c0_i32 : i32
    %c1_i32 = arith.constant 1 : i32
    %2 = arith.select %1, %c1_i32, %c8_i32 : i32
    %3 = vector.broadcast %2 : i32 to vector<64x1xi32>
    %4 = arith.remsi %0, %3 : vector<64x1xi32>
    %c0_i32_0 = arith.constant 0 : i32
    %5 = vector.broadcast %c0_i32_0 : i32 to vector<64x1xi32>
    %6 = arith.cmpi ne, %4, %5 : vector<64x1xi32>
    %c0_i32_1 = arith.constant 0 : i32
    %7 = vector.broadcast %c0_i32_1 : i32 to vector<64x1xi32>
    %8 = arith.cmpi slt, %4, %7 : vector<64x1xi32>
    %c0_i32_2 = arith.constant 0 : i32
    %9 = arith.cmpi slt, %2, %c0_i32_2 : i32
    %10 = vector.broadcast %9 : i1 to vector<64x1xi1>
    %11 = vector.broadcast %10 : vector<64x1xi1> to vector<64x1xi1>
    %12 = arith.xori %8, %11 : vector<64x1xi1>
    %13 = arith.andi %12, %6 : vector<64x1xi1>
    %14 = vector.broadcast %2 : i32 to vector<64x1xi32>
    %15 = arith.addi %4, %14 : vector<64x1xi32>
    %16 = arith.select %13, %15, %4 : vector<64x1xi1>, vector<64x1xi32>
    %c0_i32_3 = arith.constant 0 : i32
    %17 = vector.broadcast %c0_i32_3 : i32 to vector<64x1xi32>
    %18 = arith.cmpi sgt, %16, %17 : vector<64x1xi32>
    %c7_i32 = arith.constant 7 : i32
    %19 = vector.broadcast %c7_i32 : i32 to vector<64x1xi32>
    %20 = arith.cmpi slt, %16, %19 : vector<64x1xi32>
    %c0 = arith.constant 0 : index
    %c0_4 = arith.constant 0 : index
    %c0_5 = arith.constant 0 : index
    %21 = vector.load %arg1[%c0, %c0_4, %c0_5] : memref<1x64x16xf32, #tpu.memory_space<vmem>>, vector<1x64x16xf32>
    %22 = vector.shape_cast %21 : vector<1x64x16xf32> to vector<64x16xf32>
    %23 = vector.extract_strided_slice %22 {offsets = [0, 0], sizes = [64, 4], strides = [1, 1]} : vector<64x16xf32> to vector<64x4xf32>
    %24 = vector.extract_strided_slice %22 {offsets = [0, 4], sizes = [64, 4], strides = [1, 1]} : vector<64x16xf32> to vector<64x4xf32>
    %25 = arith.maximumf %23, %24 : vector<64x4xf32>
    %26 = vector.extract_strided_slice %22 {offsets = [0, 8], sizes = [64, 4], strides = [1, 1]} : vector<64x16xf32> to vector<64x4xf32>
    %27 = vector.extract_strided_slice %22 {offsets = [0, 12], sizes = [64, 4], strides = [1, 1]} : vector<64x16xf32> to vector<64x4xf32>
    %28 = arith.maximumf %26, %27 : vector<64x4xf32>
    %29 = arith.maximumf %25, %28 : vector<64x4xf32>
    %cst = arith.constant 0.000000e+00 : f32
    %30 = vector.broadcast %cst : f32 to vector<16x4xf32>
    %c0_6 = arith.constant 0 : index
    %c0_7 = arith.constant 0 : index
    %31 = vector.load %arg7[%c0_6, %c0_7] : memref<96x4xf32, #tpu.memory_space<vmem>>, vector<16x4xf32>
    tpu.vector_store %arg7[%c0_6, %c0_7], %30 {strides = array<i32>} : memref<96x4xf32, #tpu.memory_space<vmem>>, vector<16x4xf32>,
    %cst_8 = arith.constant 0.000000e+00 : f32
    %32 = vector.broadcast %cst_8 : f32 to vector<16x4xf32>
    %c80 = arith.constant 80 : index
    %c0_9 = arith.constant 0 : index
    %33 = vector.load %arg7[%c80, %c0_9] : memref<96x4xf32, #tpu.memory_space<vmem>>, vector<16x4xf32>
    tpu.vector_store %arg7[%c80, %c0_9], %32 {strides = array<i32>} : memref<96x4xf32, #tpu.memory_space<vmem>>, vector<16x4xf32>,
    %c16 = arith.constant 16 : index
    %c0_10 = arith.constant 0 : index
    %34 = vector.load %arg7[%c16, %c0_10] : memref<96x4xf32, #tpu.memory_space<vmem>>, vector<64x4xf32>
    tpu.vector_store %arg7[%c16, %c0_10], %29 {strides = array<i32>} : memref<96x4xf32, #tpu.memory_space<vmem>>, vector<64x4xf32>,
    %c7 = arith.constant 7 : index
    %c0_11 = arith.constant 0 : index
    %35 = vector.load %arg7[%c7, %c0_11] : memref<96x4xf32, #tpu.memory_space<vmem>>, vector<64x4xf32>
    %cst_12 = arith.constant 0.000000e+00 : f32
    %36 = vector.shape_cast %18 : vector<64x1xi1> to vector<64x1xi1>
    %37 = vector.broadcast %36 : vector<64x1xi1> to vector<64x4xi1>
    %38 = vector.broadcast %cst_12 : f32 to vector<64x4xf32>
    %39 = arith.select %37, %35, %38 : vector<64x4xi1>, vector<64x4xf32>
    %c8 = arith.constant 8 : index
    %c0_13 = arith.constant 0 : index
    %40 = vector.load %arg7[%c8, %c0_13] : memref<96x4xf32, #tpu.memory_space<vmem>>, vector<64x4xf32>
    %c9 = arith.constant 9 : index
    %c0_14 = arith.constant 0 : index
    %41 = vector.load %arg7[%c9, %c0_14] : memref<96x4xf32, #tpu.memory_space<vmem>>, vector<64x4xf32>
    %cst_15 = arith.constant 0.000000e+00 : f32
    %42 = vector.shape_cast %20 : vector<64x1xi1> to vector<64x1xi1>
    %43 = vector.broadcast %42 : vector<64x1xi1> to vector<64x4xi1>
    %44 = vector.broadcast %cst_15 : f32 to vector<64x4xf32>
    %45 = arith.select %43, %41, %44 : vector<64x4xi1>, vector<64x4xf32>
    %c15 = arith.constant 15 : index
    %c0_16 = arith.constant 0 : index
    %46 = vector.load %arg7[%c15, %c0_16] : memref<96x4xf32, #tpu.memory_space<vmem>>, vector<64x4xf32>
    %cst_17 = arith.constant 0.000000e+00 : f32
    %47 = vector.shape_cast %18 : vector<64x1xi1> to vector<64x1xi1>
    %48 = vector.broadcast %47 : vector<64x1xi1> to vector<64x4xi1>
    %49 = vector.broadcast %cst_17 : f32 to vector<64x4xf32>
    %50 = arith.select %48, %46, %49 : vector<64x4xi1>, vector<64x4xf32>
    %c16_18 = arith.constant 16 : index
    %c0_19 = arith.constant 0 : index
    %51 = vector.load %arg7[%c16_18, %c0_19] : memref<96x4xf32, #tpu.memory_space<vmem>>, vector<64x4xf32>
    %c17 = arith.constant 17 : index
    %c0_20 = arith.constant 0 : index
    %52 = vector.load %arg7[%c17, %c0_20] : memref<96x4xf32, #tpu.memory_space<vmem>>, vector<64x4xf32>
    %cst_21 = arith.constant 0.000000e+00 : f32
    %53 = vector.shape_cast %20 : vector<64x1xi1> to vector<64x1xi1>
    %54 = vector.broadcast %53 : vector<64x1xi1> to vector<64x4xi1>
    %55 = vector.broadcast %cst_21 : f32 to vector<64x4xf32>
    %56 = arith.select %54, %52, %55 : vector<64x4xi1>, vector<64x4xf32>
    %c23 = arith.constant 23 : index
    %c0_22 = arith.constant 0 : index
    %57 = vector.load %arg7[%c23, %c0_22] : memref<96x4xf32, #tpu.memory_space<vmem>>, vector<64x4xf32>
    %cst_23 = arith.constant 0.000000e+00 : f32
    %58 = vector.shape_cast %18 : vector<64x1xi1> to vector<64x1xi1>
    %59 = vector.broadcast %58 : vector<64x1xi1> to vector<64x4xi1>
    %60 = vector.broadcast %cst_23 : f32 to vector<64x4xf32>
    %61 = arith.select %59, %57, %60 : vector<64x4xi1>, vector<64x4xf32>
    %c24 = arith.constant 24 : index
    %c0_24 = arith.constant 0 : index
    %62 = vector.load %arg7[%c24, %c0_24] : memref<96x4xf32, #tpu.memory_space<vmem>>, vector<64x4xf32>
    %c25 = arith.constant 25 : index
    %c0_25 = arith.constant 0 : index
    %63 = vector.load %arg7[%c25, %c0_25] : memref<96x4xf32, #tpu.memory_space<vmem>>, vector<64x4xf32>
    %cst_26 = arith.constant 0.000000e+00 : f32
    %64 = vector.shape_cast %20 : vector<64x1xi1> to vector<64x1xi1>
    %65 = vector.broadcast %64 : vector<64x1xi1> to vector<64x4xi1>
    %66 = vector.broadcast %cst_26 : f32 to vector<64x4xf32>
    %67 = arith.select %65, %63, %66 : vector<64x4xi1>, vector<64x4xf32>
    %68 = tpu.concatenate %39, %40, %45, %50, %51, %56, %61, %62, %67 in 1 : vector<64x4xf32>, vector<64x4xf32>, vector<64x4xf32>, vector<64x4xf32>, vector<64x4xf32>, vector<64x4xf32>, vector<64x4xf32>, vector<64x4xf32>, vector<64x4xf32> -> vector<64x36xf32>
    %69 = arith.truncf %68 : vector<64x36xf32> to vector<64x36xbf16>
    %c0_27 = arith.constant 0 : index
    %c0_28 = arith.constant 0 : index
    %70 = vector.load %arg2[%c0_27, %c0_28] : memref<36x8xbf16, #tpu.memory_space<vmem>>, vector<36x8xbf16>
    %cst_29 = arith.constant dense<0.000000e+00> : vector<64x8xf32>
    %71 = tpu.matmul %69, %70, %cst_29 {dimension_numbers = #tpu.dot_dimension_numbers<[1], [0], [0], [1], [0, 0, 1, 1], [], []>} : vector<64x36xbf16>, vector<36x8xbf16>, vector<64x8xf32> -> vector<64x8xf32>
    %c0_30 = arith.constant 0 : index
    %c0_31 = arith.constant 0 : index
    %72 = vector.load %arg3[%c0_30, %c0_31] : memref<1x8xf32, #tpu.memory_space<vmem>>, vector<1x8xf32>
    %73 = vector.broadcast %72 : vector<1x8xf32> to vector<64x8xf32>
    %74 = arith.addf %71, %73 : vector<64x8xf32>
    %cst_32 = arith.constant 0.000000e+00 : f32
    %75 = vector.broadcast %cst_32 : f32 to vector<64x8xf32>
    %76 = arith.cmpf ogt, %74, %75 : vector<64x8xf32>
    %cst_33 = arith.constant 0.00999999977 : f32
    %77 = vector.broadcast %cst_33 : f32 to vector<64x8xf32>
    %78 = arith.mulf %77, %74 : vector<64x8xf32>
    %79 = arith.select %76, %74, %78 : vector<64x8xi1>, vector<64x8xf32>
    %cst_34 = arith.constant 0.000000e+00 : f32
    %80 = vector.broadcast %cst_34 : f32 to vector<16x8xf32>
    %c0_35 = arith.constant 0 : index
    %c0_36 = arith.constant 0 : index
    %81 = vector.load %arg8[%c0_35, %c0_36] : memref<96x8xf32, #tpu.memory_space<vmem>>, vector<16x8xf32>
    tpu.vector_store %arg8[%c0_35, %c0_36], %80 {strides = array<i32>} : memref<96x8xf32, #tpu.memory_space<vmem>>, vector<16x8xf32>,
    %cst_37 = arith.constant 0.000000e+00 : f32
    %82 = vector.broadcast %cst_37 : f32 to vector<16x8xf32>
    %c80_38 = arith.constant 80 : index
    %c0_39 = arith.constant 0 : index
    %83 = vector.load %arg8[%c80_38, %c0_39] : memref<96x8xf32, #tpu.memory_space<vmem>>, vector<16x8xf32>
    tpu.vector_store %arg8[%c80_38, %c0_39], %82 {strides = array<i32>} : memref<96x8xf32, #tpu.memory_space<vmem>>, vector<16x8xf32>,
    %c16_40 = arith.constant 16 : index
    %c0_41 = arith.constant 0 : index
    %84 = vector.load %arg8[%c16_40, %c0_41] : memref<96x8xf32, #tpu.memory_space<vmem>>, vector<64x8xf32>
    tpu.vector_store %arg8[%c16_40, %c0_41], %79 {strides = array<i32>} : memref<96x8xf32, #tpu.memory_space<vmem>>, vector<64x8xf32>,
    %c7_42 = arith.constant 7 : index
    %c0_43 = arith.constant 0 : index
    %85 = vector.load %arg8[%c7_42, %c0_43] : memref<96x8xf32, #tpu.memory_space<vmem>>, vector<64x8xf32>
    %cst_44 = arith.constant 0.000000e+00 : f32
    %86 = vector.shape_cast %18 : vector<64x1xi1> to vector<64x1xi1>
    %87 = vector.broadcast %86 : vector<64x1xi1> to vector<64x8xi1>
    %88 = vector.broadcast %cst_44 : f32 to vector<64x8xf32>
    %89 = arith.select %87, %85, %88 : vector<64x8xi1>, vector<64x8xf32>
    %c8_45 = arith.constant 8 : index
    %c0_46 = arith.constant 0 : index
    %90 = vector.load %arg8[%c8_45, %c0_46] : memref<96x8xf32, #tpu.memory_space<vmem>>, vector<64x8xf32>
    %c9_47 = arith.constant 9 : index
    %c0_48 = arith.constant 0 : index
    %91 = vector.load %arg8[%c9_47, %c0_48] : memref<96x8xf32, #tpu.memory_space<vmem>>, vector<64x8xf32>
    %cst_49 = arith.constant 0.000000e+00 : f32
    %92 = vector.shape_cast %20 : vector<64x1xi1> to vector<64x1xi1>
    %93 = vector.broadcast %92 : vector<64x1xi1> to vector<64x8xi1>
    %94 = vector.broadcast %cst_49 : f32 to vector<64x8xf32>
    %95 = arith.select %93, %91, %94 : vector<64x8xi1>, vector<64x8xf32>
    %c15_50 = arith.constant 15 : index
    %c0_51 = arith.constant 0 : index
    %96 = vector.load %arg8[%c15_50, %c0_51] : memref<96x8xf32, #tpu.memory_space<vmem>>, vector<64x8xf32>
    %cst_52 = arith.constant 0.000000e+00 : f32
    %97 = vector.shape_cast %18 : vector<64x1xi1> to vector<64x1xi1>
    %98 = vector.broadcast %97 : vector<64x1xi1> to vector<64x8xi1>
    %99 = vector.broadcast %cst_52 : f32 to vector<64x8xf32>
    %100 = arith.select %98, %96, %99 : vector<64x8xi1>, vector<64x8xf32>
    %c16_53 = arith.constant 16 : index
    %c0_54 = arith.constant 0 : index
    %101 = vector.load %arg8[%c16_53, %c0_54] : memref<96x8xf32, #tpu.memory_space<vmem>>, vector<64x8xf32>
    %c17_55 = arith.constant 17 : index
    %c0_56 = arith.constant 0 : index
    %102 = vector.load %arg8[%c17_55, %c0_56] : memref<96x8xf32, #tpu.memory_space<vmem>>, vector<64x8xf32>
    %cst_57 = arith.constant 0.000000e+00 : f32
    %103 = vector.shape_cast %20 : vector<64x1xi1> to vector<64x1xi1>
    %104 = vector.broadcast %103 : vector<64x1xi1> to vector<64x8xi1>
    %105 = vector.broadcast %cst_57 : f32 to vector<64x8xf32>
    %106 = arith.select %104, %102, %105 : vector<64x8xi1>, vector<64x8xf32>
    %c23_58 = arith.constant 23 : index
    %c0_59 = arith.constant 0 : index
    %107 = vector.load %arg8[%c23_58, %c0_59] : memref<96x8xf32, #tpu.memory_space<vmem>>, vector<64x8xf32>
    %cst_60 = arith.constant 0.000000e+00 : f32
    %108 = vector.shape_cast %18 : vector<64x1xi1> to vector<64x1xi1>
    %109 = vector.broadcast %108 : vector<64x1xi1> to vector<64x8xi1>
    %110 = vector.broadcast %cst_60 : f32 to vector<64x8xf32>
    %111 = arith.select %109, %107, %110 : vector<64x8xi1>, vector<64x8xf32>
    %c24_61 = arith.constant 24 : index
    %c0_62 = arith.constant 0 : index
    %112 = vector.load %arg8[%c24_61, %c0_62] : memref<96x8xf32, #tpu.memory_space<vmem>>, vector<64x8xf32>
    %c25_63 = arith.constant 25 : index
    %c0_64 = arith.constant 0 : index
    %113 = vector.load %arg8[%c25_63, %c0_64] : memref<96x8xf32, #tpu.memory_space<vmem>>, vector<64x8xf32>
    %cst_65 = arith.constant 0.000000e+00 : f32
    %114 = vector.shape_cast %20 : vector<64x1xi1> to vector<64x1xi1>
    %115 = vector.broadcast %114 : vector<64x1xi1> to vector<64x8xi1>
    %116 = vector.broadcast %cst_65 : f32 to vector<64x8xf32>
    %117 = arith.select %115, %113, %116 : vector<64x8xi1>, vector<64x8xf32>
    %118 = tpu.concatenate %89, %90, %95, %100, %101, %106, %111, %112, %117 in 1 : vector<64x8xf32>, vector<64x8xf32>, vector<64x8xf32>, vector<64x8xf32>, vector<64x8xf32>, vector<64x8xf32>, vector<64x8xf32>, vector<64x8xf32>, vector<64x8xf32> -> vector<64x72xf32>
    %119 = arith.truncf %118 : vector<64x72xf32> to vector<64x72xbf16>
    %c0_66 = arith.constant 0 : index
    %c0_67 = arith.constant 0 : index
    %120 = vector.load %arg4[%c0_66, %c0_67] : memref<72x8xbf16, #tpu.memory_space<vmem>>, vector<72x8xbf16>
    %cst_68 = arith.constant dense<0.000000e+00> : vector<64x8xf32>
    %121 = tpu.matmul %119, %120, %cst_68 {dimension_numbers = #tpu.dot_dimension_numbers<[1], [0], [0], [1], [0, 0, 1, 1], [], []>} : vector<64x72xbf16>, vector<72x8xbf16>, vector<64x8xf32> -> vector<64x8xf32>
    %c0_69 = arith.constant 0 : index
    %c0_70 = arith.constant 0 : index
    %122 = vector.load %arg5[%c0_69, %c0_70] : memref<1x8xf32, #tpu.memory_space<vmem>>, vector<1x8xf32>
    %123 = vector.broadcast %122 : vector<1x8xf32> to vector<64x8xf32>
    %124 = arith.addf %121, %123 : vector<64x8xf32>
    %cst_71 = arith.constant 0.000000e+00 : f32
    %125 = vector.broadcast %cst_71 : f32 to vector<64x8xf32>
    %126 = arith.cmpf ogt, %124, %125 : vector<64x8xf32>
    %cst_72 = arith.constant 0.00999999977 : f32
    %127 = vector.broadcast %cst_72 : f32 to vector<64x8xf32>
    %128 = arith.mulf %127, %124 : vector<64x8xf32>
    %129 = arith.select %126, %124, %128 : vector<64x8xi1>, vector<64x8xf32>
    %c0_73 = arith.constant 0 : index
    %c0_74 = arith.constant 0 : index
    %c0_75 = arith.constant 0 : index
    %130 = vector.load %arg6[%c0_73, %c0_74, %c0_75] : memref<1x64x8xf32, #tpu.memory_space<vmem>>, vector<1x64x8xf32>
    %131 = vector.shape_cast %130 : vector<1x64x8xf32> to vector<64x8xf32>
    %132 = vector.shape_cast %129 : vector<64x8xf32> to vector<1x64x8xf32>
    tpu.vector_store %arg6[%c0_73, %c0_74, %c0_75], %132 {strides = array<i32>} : memref<1x64x8xf32, #tpu.memory_space<vmem>>, vector<1x64x8xf32>,
    return
  }
  func.func @transform_0(%arg0: i32) -> (i32, i32, i32) {
    %c0_i32 = arith.constant 0 : i32
    %c0_i32_0 = arith.constant 0 : i32
    %c0_i32_1 = arith.constant 0 : i32
    return %arg0, %c0_i32, %c0_i32_0 : i32, i32, i32
  }
  func.func @transform_1(%arg0: i32) -> (i32, i32) {
    %c0_i32 = arith.constant 0 : i32
    %c0_i32_0 = arith.constant 0 : i32
    %c0_i32_1 = arith.constant 0 : i32
    return %c0_i32, %c0_i32_0 : i32, i32
  }
  func.func @transform_2(%arg0: i32) -> (i32, i32) {
    %c0_i32 = arith.constant 0 : i32
    %c0_i32_0 = arith.constant 0 : i32
    %c0_i32_1 = arith.constant 0 : i32
    return %c0_i32, %c0_i32_0 : i32, i32
  }
  func.func @transform_3(%arg0: i32) -> (i32, i32) {
    %c0_i32 = arith.constant 0 : i32
    %c0_i32_0 = arith.constant 0 : i32
    %c0_i32_1 = arith.constant 0 : i32
    return %c0_i32, %c0_i32_0 : i32, i32
  }
  func.func @transform_4(%arg0: i32) -> (i32, i32) {
    %c0_i32 = arith.constant 0 : i32
    %c0_i32_0 = arith.constant 0 : i32
    %c0_i32_1 = arith.constant 0 : i32
    return %c0_i32, %c0_i32_0 : i32, i32
  }
  func.func @transform_5(%arg0: i32) -> (i32, i32, i32) {
    %c0_i32 = arith.constant 0 : i32
    %c0_i32_0 = arith.constant 0 : i32
    %c0_i32_1 = arith.constant 0 : i32
    return %arg0, %c0_i32, %c0_i32_0 : i32, i32, i32
  }
}

</mosaic_0001>

<llo_original>
// kernel: down_forward.1
$region0: #{down_forward.1}
  #allocation0 [shape = 'u32[]', space=smem, size = 0x4, offset = 0x4, fixed_abs, tag = 'smem constant byte address 0x4 - core index']
  #allocation1 [shape = 'u32[144,128]{1,0:T(1,128)}', space=vmem, size = 0x12000, scoped, tag = 'internal scratch']
  #allocation2 [shape = 'f32[96,4]{1,0:T(8,128)}', space=vmem, size = 0xc000, scoped, tag = 'scratch operand']
  #allocation3 [shape = 'f32[96,8]{1,0:T(8,128)}', space=vmem, size = 0xc000, scoped, tag = 'scratch operand']
  %s0 = inlined_call_operand.vmem [shape: f32[2,64,16], index: 0, kind: input, shape index: {}]
  %s1 = inlined_call_operand.vmem [shape: bf16[36,8], index: 1, kind: input, shape index: {}]
  %s2 = inlined_call_operand.vmem [shape: f32[1,8], index: 2, kind: input, shape index: {}]
  %s3 = inlined_call_operand.vmem [shape: bf16[72,8], index: 3, kind: input, shape index: {}]
  %s4 = inlined_call_operand.vmem [shape: f32[1,8], index: 4, kind: input, shape index: {}]
  %s5 = inlined_call_operand.vmem [shape: f32[2,64,8], index: 5, kind: output, shape index: {}]
  %s6 = sld [smem:[#allocation0]]
  $region53: #{down_forward.1} parent=0
    _
  %s8 = ssub.s32 1, %s6
  %s9 = scalar_select 0, %s8, %s6
  loop: start=0, step=1, limit=4
  $region2: #{down_forward.1} parent=0 // loop_pre_header
    _
  $region3: #{down_forward.1} parent=0 // loop_header
    %s11 = sphi 0, %s15
    %p12 = scmp.ge.s32.totalorder %s11, 4
    %s21 = sphi 0, %s23
    %s24 = sphi 0, %s21
    %s25 = sphi 0, %s24
    %s41 = sphi 0, %s25
    %s45 = sphi 0, %s45
    %s47 = sphi 0, %s45
    %s48 = sphi 0, %s47
    %s62 = sphi 0, %s48
    %s66 = sphi 0, %s66
    %s68 = sphi 0, %s66
    %s69 = sphi 0, %s68
    %s83 = sphi 0, %s69
    %s87 = sphi 0, %s87
    %s89 = sphi 0, %s87
    %s90 = sphi 0, %s89
    %s104 = sphi 0, %s90
    %s108 = sphi 0, %s108
    %s110 = sphi 0, %s108
    %s111 = sphi 0, %s110
    %s125 = sphi 0, %s111
    %s131 = sphi 0, %s133
    %s134 = sphi 0, %s131
    %s135 = sphi 0, %s134
    %s151 = sphi 0, %s135
  $region4: #{down_forward.1} parent=0 // loop_header_branch
    %14 = sbr.rel (%p12) target = $region8
  $region5: #{down_forward.1} parent=0 // loop_body
    %s16 = ssub.s32 %s11, 1
    %s17 = ssub.s32 %s11, 2
    %s18 = sadd.s32 %s11, 1
    %s19 = ssub.s32 %s11, %s18
    %p20 = scmp.eq.s32.totalorder %s19, 0
    %s22 = sadd.s32 %s21, 1
    %s23 = scalar_select %p20, %s21, %s22
    %p26 = pneg %p20
    %p27 = scmp.eq.s32.totalorder %s11, 1
    %p28 = por %p26, %p27
    %p29 = scmp.ne.s32.totalorder %s21, %s24
    %p30 = scmp.eq.s32.totalorder %s11, 0
    %p31 = por %p29, %p30
    %p32 = scmp.ne.s32.totalorder %s21, %s24
    %p33 = scmp.eq.s32.totalorder %s16, 1
    %p34 = por %p32, %p33
    %p35 = scmp.ne.s32.totalorder %s24, %s25
    %p36 = scmp.eq.s32.totalorder %s16, 0
    %p37 = por %p35, %p36
    %p38 = scmp.ne.s32.totalorder %s24, %s25
    %p39 = scmp.eq.s32.totalorder %s17, 1
    %p40 = por %p38, %p39
    %p42 = scmp.ne.s32.totalorder %s25, %s41
    %p43 = scmp.eq.s32.totalorder %s17, 0
    %p44 = por %p42, %p43
    %s46 = sadd.s32 %s45, 1
    %p49 = scmp.eq.s32.totalorder %s11, 1
    %p50 = scmp.ne.s32.totalorder %s45, %s47
    %p51 = scmp.eq.s32.totalorder %s11, 0
    %p52 = por %p50, %p51
    %p53 = scmp.ne.s32.totalorder %s45, %s47
    %p54 = scmp.eq.s32.totalorder %s16, 1
    %p55 = por %p53, %p54
    %p56 = scmp.ne.s32.totalorder %s47, %s48
    %p57 = scmp.eq.s32.totalorder %s16, 0
    %p58 = por %p56, %p57
    %p59 = scmp.ne.s32.totalorder %s47, %s48
    %p60 = scmp.eq.s32.totalorder %s17, 1
    %p61 = por %p59, %p60
    %p63 = scmp.ne.s32.totalorder %s48, %s62
    %p64 = scmp.eq.s32.totalorder %s17, 0
    %p65 = por %p63, %p64
    %s67 = sadd.s32 %s66, 1
    %p70 = scmp.eq.s32.totalorder %s11, 1
    %p71 = scmp.ne.s32.totalorder %s66, %s68
    %p72 = scmp.eq.s32.totalorder %s11, 0
    %p73 = por %p71, %p72
    %p74 = scmp.ne.s32.totalorder %s66, %s68
    %p75 = scmp.eq.s32.totalorder %s16, 1
    %p76 = por %p74, %p75
    %p77 = scmp.ne.s32.totalorder %s68, %s69
    %p78 = scmp.eq.s32.totalorder %s16, 0
    %p79 = por %p77, %p78
    %p80 = scmp.ne.s32.totalorder %s68, %s69
    %p81 = scmp.eq.s32.totalorder %s17, 1
    %p82 = por %p80, %p81
    %p84 = scmp.ne.s32.totalorder %s69, %s83
    %p85 = scmp.eq.s32.totalorder %s17, 0
    %p86 = por %p84, %p85
    %s88 = sadd.s32 %s87, 1
    %p91 = scmp.eq.s32.totalorder %s11, 1
    %p92 = scmp.ne.s32.totalorder %s87, %s89
    %p93 = scmp.eq.s32.totalorder %s11, 0
    %p94 = por %p92, %p93
    %p95 = scmp.ne.s32.totalorder %s87, %s89
    %p96 = scmp.eq.s32.totalorder %s16, 1
    %p97 = por %p95, %p96
    %p98 = scmp.ne.s32.totalorder %s89, %s90
    %p99 = scmp.eq.s32.totalorder %s16, 0
    %p100 = por %p98, %p99
    %p101 = scmp.ne.s32.totalorder %s89, %s90
    %p102 = scmp.eq.s32.totalorder %s17, 1
    %p103 = por %p101, %p102
    %p105 = scmp.ne.s32.totalorder %s90, %s104
    %p106 = scmp.eq.s32.totalorder %s17, 0
    %p107 = por %p105, %p106
    %s109 = sadd.s32 %s108, 1
    %p112 = scmp.eq.s32.totalorder %s11, 1
    %p113 = scmp.ne.s32.totalorder %s108, %s110
    %p114 = scmp.eq.s32.totalorder %s11, 0
    %p115 = por %p113, %p114
    %p116 = scmp.ne.s32.totalorder %s108, %s110
    %p117 = scmp.eq.s32.totalorder %s16, 1
    %p118 = por %p116, %p117
    %p119 = scmp.ne.s32.totalorder %s110, %s111
    %p120 = scmp.eq.s32.totalorder %s16, 0
    %p121 = por %p119, %p120
    %p122 = scmp.ne.s32.totalorder %s110, %s111
    %p123 = scmp.eq.s32.totalorder %s17, 1
    %p124 = por %p122, %p123
    %p126 = scmp.ne.s32.totalorder %s111, %s125
    %p127 = scmp.eq.s32.totalorder %s17, 0
    %p128 = por %p126, %p127
    %s129 = ssub.s32 %s11, %s18
    %p130 = scmp.eq.s32.totalorder %s129, 0
    %s132 = sadd.s32 %s131, 1
    %s133 = scalar_select %p130, %s131, %s132
    %p136 = pneg %p130
    %p137 = scmp.eq.s32.totalorder %s11, 1
    %p138 = por %p136, %p137
    %p139 = scmp.ne.s32.totalorder %s131, %s134
    %p140 = scmp.eq.s32.totalorder %s11, 0
    %p141 = por %p139, %p140
    %p142 = scmp.ne.s32.totalorder %s131, %s134
    %p143 = scmp.eq.s32.totalorder %s16, 1
    %p144 = por %p142, %p143
    %p145 = scmp.ne.s32.totalorder %s134, %s135
    %p146 = scmp.eq.s32.totalorder %s16, 0
    %p147 = por %p145, %p146
    %p148 = scmp.ne.s32.totalorder %s134, %s135
    %p149 = scmp.eq.s32.totalorder %s17, 1
    %p150 = por %p148, %p149
    %p152 = scmp.ne.s32.totalorder %s135, %s151
    %p153 = scmp.eq.s32.totalorder %s17, 0
    %p154 = por %p152, %p153
    %p155 = scmp.le.s32.totalorder 1, %s11
    %p156 = scmp.lt.s32.totalorder %s11, 3
    %p157 = pnand %p155, %p156
    %p158 = pneg %p157
    // Predicated region
    $region9: #{down_forward.1} parent=5 // pred_check
      _
    $region10: #{down_forward.1} parent=5 // pred_check_branch
      %160 = sbr.rel (%p157) target = $region12
    $region11: #{down_forward.1} parent=5 // pred_region
      %s161 = ssub.s32 %s11, 1
      // Predicated region
      $region13: #{down_forward.1} parent=11 // pred_check
        %p162 = pneg %p58
      $region14: #{down_forward.1} parent=11 // pred_check_branch
        %164 = sbr.rel (%p162) target = $region16
      $region15: #{down_forward.1} parent=11 // pred_region
        _
      $region16: #{down_forward.1} parent=11 // pred_fallthru
        _
      // Predicated region
      $region17: #{down_forward.1} parent=11 // pred_check
        %p165 = pneg %p79
      $region18: #{down_forward.1} parent=11 // pred_check_branch
        %167 = sbr.rel (%p165) target = $region20
      $region19: #{down_forward.1} parent=11 // pred_region
        _
      $region20: #{down_forward.1} parent=11 // pred_fallthru
        _
      // Predicated region
      $region21: #{down_forward.1} parent=11 // pred_check
        %p168 = pneg %p100
      $region22: #{down_forward.1} parent=11 // pred_check_branch
        %170 = sbr.rel (%p168) target = $region24
      $region23: #{down_forward.1} parent=11 // pred_region
        _
      $region24: #{down_forward.1} parent=11 // pred_fallthru
        _
      // Predicated region
      $region25: #{down_forward.1} parent=11 // pred_check
        %p171 = pneg %p121
      $region26: #{down_forward.1} parent=11 // pred_check_branch
        %173 = sbr.rel (%p171) target = $region28
      $region27: #{down_forward.1} parent=11 // pred_region
        _
      $region28: #{down_forward.1} parent=11 // pred_fallthru
        _
    $region12: #{down_forward.1} parent=5 // pred_fallthru
      _
    %p174 = scmp.lt.s32.totalorder %s11, 2
    // Predicated region
    $region29: #{down_forward.1} parent=5 // pred_check
      %p175 = pneg %p174
    $region30: #{down_forward.1} parent=5 // pred_check_branch
      %177 = sbr.rel (%p175) target = $region32
    $region31: #{down_forward.1} parent=5 // pred_region
      // Predicated region
      $region33: #{down_forward.1} parent=31 // pred_check
        %p178 = pneg %p31
      $region34: #{down_forward.1} parent=31 // pred_check_branch
        %180 = sbr.rel (%p178) target = $region36
      $region35: #{down_forward.1} parent=31 // pred_region
        %p181 = scmp.lt.s32.totalorder %s11, 1
        %s182 = scalar_select %p181, %s11, 1
        %s183 = smul.addr %s182, 8
        %s184 = smul.addr %s183, 8
        %s185 = scalar_lea.vmem %s0, %s184
      $region36: #{down_forward.1} parent=31 // pred_fallthru
        _
    $region32: #{down_forward.1} parent=5 // pred_fallthru
      _
    %p186 = scmp.le.s32.totalorder 1, %s11
    %p187 = scmp.lt.s32.totalorder %s11, 3
    %p188 = pnand %p186, %p187
    %p189 = pneg %p188
    // Predicated region
    $region37: #{down_forward.1} parent=5 // pred_check
      _
    $region38: #{down_forward.1} parent=5 // pred_check_branch
      %191 = sbr.rel (%p188) target = $region40
    $region39: #{down_forward.1} parent=5 // pred_region
      %s192 = ssub.s32 %s11, 1
      %p193 = scmp.lt.s32.totalorder %s16, 1
      %s194 = scalar_select %p193, %s16, 1
      %s195 = smul.addr %s194, 8
      %s196 = smul.addr %s195, 8
      %s197 = scalar_lea.vmem %s0, %s196
      %p198 = pneg %p37
      %p199 = pneg %p34
      %p200 = pneg %p58
      %p201 = pneg %p55
      %p202 = pneg %p79
      %p203 = pneg %p76
      %p204 = pneg %p100
      %p205 = pneg %p97
      %p206 = pneg %p121
      %p207 = pneg %p118
      %p208 = pneg %p147
      %p209 = pneg %p144
      %p210 = scmp.lt.s32.totalorder %s16, 1
      %s211 = scalar_select %p210, %s16, 1
      %s212 = smul.addr %s211, 8
      %s213 = smul.addr %s212, 8
      %s214 = scalar_lea.vmem %s5, %s213
      %p215 = scmp.lt.s32.totalorder %s16, 1
      %s216 = scalar_select %p215, %s16, 1
      %s217 = smul.addr %s216, 8
      %s218 = smul.addr %s217, 8
      %s219 = scalar_lea.vmem %s0, %s218
      %p220 = scmp.lt.s32.totalorder %s16, 1
      %s221 = scalar_select %p220, %s16, 1
      %s222 = smul.addr %s221, 8
      %s223 = smul.addr %s222, 8
      %s224 = scalar_lea.vmem %s5, %s223
      %v226 = vlaneseq
      %v227 = vshrl.u32 %v226, 7
      %v228 = vadd.s32 %v227, 8
      %v229 = vadd.s32 %v227, 16
      %v230 = vadd.s32 %v227, 24
      %v231 = vadd.s32 %v227, 32
      %v232 = vadd.s32 %v227, 40
      %v233 = vadd.s32 %v227, 48
      %v234 = vadd.s32 %v227, 56
      %vm235 = vcmp.lt.s32.totalorder %v227, 0
      %v236 = vsub.s32 0, %v227
      %v237 = vsel %vm235, %v236, %v227
      %v238 = vshrl.u32 %v237, 3
      %v239 = vand.u32 %v237, 7
      %v240 = vsub.s32 0, %v239
      %v241 = vsel %vm235, %v240, %v239
      %vm242 = vcmp.lt.s32.totalorder %v228, 0
      %v243 = vsub.s32 0, %v228
      %v244 = vsel %vm242, %v243, %v228
      %v245 = vshrl.u32 %v244, 3
      %v246 = vand.u32 %v244, 7
      %v247 = vsub.s32 0, %v246
      %v248 = vsel %vm242, %v247, %v246
      %vm249 = vcmp.lt.s32.totalorder %v229, 0
      %v250 = vsub.s32 0, %v229
      %v251 = vsel %vm249, %v250, %v229
      %v252 = vshrl.u32 %v251, 3
      %v253 = vand.u32 %v251, 7
      %v254 = vsub.s32 0, %v253
      %v255 = vsel %vm249, %v254, %v253
      %vm256 = vcmp.lt.s32.totalorder %v230, 0
      %v257 = vsub.s32 0, %v230
      %v258 = vsel %vm256, %v257, %v230
      %v259 = vshrl.u32 %v258, 3
      %v260 = vand.u32 %v258, 7
      %v261 = vsub.s32 0, %v260
      %v262 = vsel %vm256, %v261, %v260
      %vm263 = vcmp.lt.s32.totalorder %v231, 0
      %v264 = vsub.s32 0, %v231
      %v265 = vsel %vm263, %v264, %v231
      %v266 = vshrl.u32 %v265, 3
      %v267 = vand.u32 %v265, 7
      %v268 = vsub.s32 0, %v267
      %v269 = vsel %vm263, %v268, %v267
      %vm270 = vcmp.lt.s32.totalorder %v232, 0
      %v271 = vsub.s32 0, %v232
      %v272 = vsel %vm270, %v271, %v232
      %v273 = vshrl.u32 %v272, 3
      %v274 = vand.u32 %v272, 7
      %v275 = vsub.s32 0, %v274
      %v276 = vsel %vm270, %v275, %v274
      %vm277 = vcmp.lt.s32.totalorder %v233, 0
      %v278 = vsub.s32 0, %v233
      %v279 = vsel %vm277, %v278, %v233
      %v280 = vshrl.u32 %v279, 3
      %v281 = vand.u32 %v279, 7
      %v282 = vsub.s32 0, %v281
      %v283 = vsel %vm277, %v282, %v281
      %vm284 = vcmp.lt.s32.totalorder %v234, 0
      %v285 = vsub.s32 0, %v234
      %v286 = vsel %vm284, %v285, %v234
      %v287 = vshrl.u32 %v286, 3
      %v288 = vand.u32 %v286, 7
      %v289 = vsub.s32 0, %v288
      %v290 = vsel %vm284, %v289, %v288
      %vm291 = vcmp.ne.s32.totalorder %v241, 0
      %vm292 = vcmp.ne.s32.totalorder %v248, 0
      %vm293 = vcmp.ne.s32.totalorder %v255, 0
      %vm294 = vcmp.ne.s32.totalorder %v262, 0
      %vm295 = vcmp.ne.s32.totalorder %v269, 0
      %vm296 = vcmp.ne.s32.totalorder %v276, 0
      %vm297 = vcmp.ne.s32.totalorder %v283, 0
      %vm298 = vcmp.ne.s32.totalorder %v290, 0
      %vm299 = vcmp.lt.s32.totalorder %v241, 0
      %vm300 = vcmp.lt.s32.totalorder %v248, 0
      %vm301 = vcmp.lt.s32.totalorder %v255, 0
      %vm302 = vcmp.lt.s32.totalorder %v262, 0
      %vm303 = vcmp.lt.s32.totalorder %v269, 0
      %vm304 = vcmp.lt.s32.totalorder %v276, 0
      %vm305 = vcmp.lt.s32.totalorder %v283, 0
      %vm306 = vcmp.lt.s32.totalorder %v290, 0
      %vm307 = vmand %vm299, %vm291
      %vm308 = vmand %vm300, %vm292
      %vm309 = vmand %vm301, %vm293
      %vm310 = vmand %vm302, %vm294
      %vm311 = vmand %vm303, %vm295
      %vm312 = vmand %vm304, %vm296
      %vm313 = vmand %vm305, %vm297
      %vm314 = vmand %vm306, %vm298
      %v315 = vadd.s32 %v241, 8
      %v316 = vadd.s32 %v248, 8
      %v317 = vadd.s32 %v255, 8
      %v318 = vadd.s32 %v262, 8
      %v319 = vadd.s32 %v269, 8
      %v320 = vadd.s32 %v276, 8
      %v321 = vadd.s32 %v283, 8
      %v322 = vadd.s32 %v290, 8
      %v323 = vsel %vm307, %v315, %v241
      %v324 = vsel %vm308, %v316, %v248
      %v325 = vsel %vm309, %v317, %v255
      %v326 = vsel %vm310, %v318, %v262
      %v327 = vsel %vm311, %v319, %v269
      %v328 = vsel %vm312, %v320, %v276
      %v329 = vsel %vm313, %v321, %v283
      %v330 = vsel %vm314, %v322, %v290
      %vm331 = vcmp.gt.s32.totalorder %v323, 0
      %vm332 = vcmp.gt.s32.totalorder %v324, 0
      %vm333 = vcmp.gt.s32.totalorder %v325, 0
      %vm334 = vcmp.gt.s32.totalorder %v326, 0
      %vm335 = vcmp.gt.s32.totalorder %v327, 0
      %vm336 = vcmp.gt.s32.totalorder %v328, 0
      %vm337 = vcmp.gt.s32.totalorder %v329, 0
      %vm338 = vcmp.gt.s32.totalorder %v330, 0
      %vm339 = vcmp.lt.s32.totalorder %v323, 7
      %vm340 = vcmp.lt.s32.totalorder %v324, 7
      %vm341 = vcmp.lt.s32.totalorder %v325, 7
      %vm342 = vcmp.lt.s32.totalorder %v326, 7
      %vm343 = vcmp.lt.s32.totalorder %v327, 7
      %vm344 = vcmp.lt.s32.totalorder %v328, 7
      %vm345 = vcmp.lt.s32.totalorder %v329, 7
      %vm346 = vcmp.lt.s32.totalorder %v330, 7
      %v347 = vld [vmem:[%s219] sm:$0xff]
      %v348 = vld [vmem:[%s219 + $0x8] sm:$0xff]
      %v349 = vld [vmem:[%s219 + $0x10] sm:$0xff]
      %v350 = vld [vmem:[%s219 + $0x18] sm:$0xff]
      %v351 = vld [vmem:[%s219 + $0x20] sm:$0xff]
      %v352 = vld [vmem:[%s219 + $0x28] sm:$0xff]
      %v353 = vld [vmem:[%s219 + $0x30] sm:$0xff]
      %v354 = vld [vmem:[%s219 + $0x38] sm:$0xff]
      %363 = vrot.lane.b32.xlu0 %v347, 124
      %v364 = vpop.permute.xlu0 %363
      %365 = vrot.lane.b32.xlu0 %v348, 124
      %v366 = vpop.permute.xlu0 %365
      %367 = vrot.lane.b32.xlu0 %v349, 124
      %v368 = vpop.permute.xlu0 %367
      %369 = vrot.lane.b32.xlu0 %v350, 124
      %v370 = vpop.permute.xlu0 %369
      %371 = vrot.lane.b32.xlu0 %v351, 124
      %v372 = vpop.permute.xlu0 %371
      %373 = vrot.lane.b32.xlu0 %v352, 124
      %v374 = vpop.permute.xlu0 %373
      %375 = vrot.lane.b32.xlu0 %v353, 124
      %v376 = vpop.permute.xlu0 %375
      %377 = vrot.lane.b32.xlu0 %v354, 124
      %v378 = vpop.permute.xlu0 %377
      %v387 = vmax.f32 %v347, %v364
      %v388 = vmax.f32 %v348, %v366
      %v389 = vmax.f32 %v349, %v368
      %v390 = vmax.f32 %v350, %v370
      %v391 = vmax.f32 %v351, %v372
      %v392 = vmax.f32 %v352, %v374
      %v393 = vmax.f32 %v353, %v376
      %v394 = vmax.f32 %v354, %v378
      %403 = vrot.lane.b32.xlu0 %v387, 120
      %v404 = vpop.permute.xlu0 %403
      %405 = vrot.lane.b32.xlu0 %v388, 120
      %v406 = vpop.permute.xlu0 %405
      %407 = vrot.lane.b32.xlu0 %v389, 120
      %v408 = vpop.permute.xlu0 %407
      %409 = vrot.lane.b32.xlu0 %v390, 120
      %v410 = vpop.permute.xlu0 %409
      %411 = vrot.lane.b32.xlu0 %v391, 120
      %v412 = vpop.permute.xlu0 %411
      %413 = vrot.lane.b32.xlu0 %v392, 120
      %v414 = vpop.permute.xlu0 %413
      %415 = vrot.lane.b32.xlu0 %v393, 120
      %v416 = vpop.permute.xlu0 %415
      %417 = vrot.lane.b32.xlu0 %v394, 120
      %v418 = vpop.permute.xlu0 %417
      %v427 = vmax.f32 %v387, %v404
      %v428 = vmax.f32 %v388, %v406
      %v429 = vmax.f32 %v389, %v408
      %v430 = vmax.f32 %v390, %v410
      %v431 = vmax.f32 %v391, %v412
      %v432 = vmax.f32 %v392, %v414
      %v433 = vmax.f32 %v393, %v416
      %v434 = vmax.f32 %v394, %v418
      %vm435 = vcmask 31744
      %436 = vst.msk [vmem:[#allocation2] sm:$0xff] %vm435, 0.0
      %437 = vst.msk [vmem:[#allocation2 + $0x8] sm:$0xff] %vm435, 0.0
      %438 = vst.msk [vmem:[#allocation2 + $0x50] sm:$0xff] %vm435, 0.0
      %439 = vst.msk [vmem:[#allocation2 + $0x58] sm:$0xff] %vm435, 0.0
      %440 = vst.msk [vmem:[#allocation2 + $0x10] sm:$0xff] %vm435, %v427
      %441 = vst.msk [vmem:[#allocation2 + $0x18] sm:$0xff] %vm435, %v428
      %442 = vst.msk [vmem:[#allocation2 + $0x20] sm:$0xff] %vm435, %v429
      %443 = vst.msk [vmem:[#allocation2 + $0x28] sm:$0xff] %vm435, %v430
      %444 = vst.msk [vmem:[#allocation2 + $0x30] sm:$0xff] %vm435, %v431
      %445 = vst.msk [vmem:[#allocation2 + $0x38] sm:$0xff] %vm435, %v432
      %446 = vst.msk [vmem:[#allocation2 + $0x40] sm:$0xff] %vm435, %v433
      %447 = vst.msk [vmem:[#allocation2 + $0x48] sm:$0xff] %vm435, %v434
      %v448 = vld [vmem:[#allocation2 + $0x7] sm:$0xff]
      %v449 = vld [vmem:[#allocation2 + $0xf] sm:$0xff]
      %v450 = vld [vmem:[#allocation2 + $0x17] sm:$0xff]
      %v451 = vld [vmem:[#allocation2 + $0x1f] sm:$0xff]
      %v452 = vld [vmem:[#allocation2 + $0x27] sm:$0xff]
      %v453 = vld [vmem:[#allocation2 + $0x2f] sm:$0xff]
      %v454 = vld [vmem:[#allocation2 + $0x37] sm:$0xff]
      %v455 = vld [vmem:[#allocation2 + $0x3f] sm:$0xff]
      %v456 = vsel %vm331, 1, 0
      %v457 = vsel %vm332, 1, 0
      %v458 = vsel %vm333, 1, 0
      %v459 = vsel %vm334, 1, 0
      %v460 = vsel %vm335, 1, 0
      %v461 = vsel %vm336, 1, 0
      %v462 = vsel %vm337, 1, 0
      %v463 = vsel %vm338, 1, 0
      %vm464 = vcmp.eq.s32.totalorder %v456, 1
      %vm465 = vcmp.eq.s32.totalorder %v457, 1
      %vm466 = vcmp.eq.s32.totalorder %v458, 1
      %vm467 = vcmp.eq.s32.totalorder %v459, 1
      %vm468 = vcmp.eq.s32.totalorder %v460, 1
      %vm469 = vcmp.eq.s32.totalorder %v461, 1
      %vm470 = vcmp.eq.s32.totalorder %v462, 1
      %vm471 = vcmp.eq.s32.totalorder %v463, 1
      %v472 = vsel %vm464, %v448, 0.0
      %v473 = vsel %vm465, %v449, 0.0
      %v474 = vsel %vm466, %v450, 0.0
      %v475 = vsel %vm467, %v451, 0.0
      %v476 = vsel %vm468, %v452, 0.0
      %v477 = vsel %vm469, %v453, 0.0
      %v478 = vsel %vm470, %v454, 0.0
      %v479 = vsel %vm471, %v455, 0.0
      %v480 = vld [vmem:[#allocation2 + $0x8] sm:$0xff]
      %v481 = vld [vmem:[#allocation2 + $0x10] sm:$0xff]
      %v482 = vld [vmem:[#allocation2 + $0x18] sm:$0xff]
      %v483 = vld [vmem:[#allocation2 + $0x20] sm:$0xff]
      %v484 = vld [vmem:[#allocation2 + $0x28] sm:$0xff]
      %v485 = vld [vmem:[#allocation2 + $0x30] sm:$0xff]
      %v486 = vld [vmem:[#allocation2 + $0x38] sm:$0xff]
      %v487 = vld [vmem:[#allocation2 + $0x40] sm:$0xff]
      %v488 = vld [vmem:[#allocation2 + $0x9] sm:$0xff]
      %v489 = vld [vmem:[#allocation2 + $0x11] sm:$0xff]
      %v490 = vld [vmem:[#allocation2 + $0x19] sm:$0xff]
      %v491 = vld [vmem:[#allocation2 + $0x21] sm:$0xff]
      %v492 = vld [vmem:[#allocation2 + $0x29] sm:$0xff]
      %v493 = vld [vmem:[#allocation2 + $0x31] sm:$0xff]
      %v494 = vld [vmem:[#allocation2 + $0x39] sm:$0xff]
      %v495 = vld [vmem:[#allocation2 + $0x41] sm:$0xff]
      %v496 = vsel %vm339, 1, 0
      %v497 = vsel %vm340, 1, 0
      %v498 = vsel %vm341, 1, 0
      %v499 = vsel %vm342, 1, 0
      %v500 = vsel %vm343, 1, 0
      %v501 = vsel %vm344, 1, 0
      %v502 = vsel %vm345, 1, 0
      %v503 = vsel %vm346, 1, 0
      %vm504 = vcmp.eq.s32.totalorder %v496, 1
      %vm505 = vcmp.eq.s32.totalorder %v497, 1
      %vm506 = vcmp.eq.s32.totalorder %v498, 1
      %vm507 = vcmp.eq.s32.totalorder %v499, 1
      %vm508 = vcmp.eq.s32.totalorder %v500, 1
      %vm509 = vcmp.eq.s32.totalorder %v501, 1
      %vm510 = vcmp.eq.s32.totalorder %v502, 1
      %vm511 = vcmp.eq.s32.totalorder %v503, 1
      %v512 = vsel %vm504, %v488, 0.0
      %v513 = vsel %vm505, %v489, 0.0
      %v514 = vsel %vm506, %v490, 0.0
      %v515 = vsel %vm507, %v491, 0.0
      %v516 = vsel %vm508, %v492, 0.0
      %v517 = vsel %vm509, %v493, 0.0
      %v518 = vsel %vm510, %v494, 0.0
      %v519 = vsel %vm511, %v495, 0.0
      %v520 = vld [vmem:[#allocation2 + $0x47] sm:$0xff]
      %v521 = vsel %vm464, %v449, 0.0
      %v522 = vsel %vm465, %v450, 0.0
      %v523 = vsel %vm466, %v451, 0.0
      %v524 = vsel %vm467, %v452, 0.0
      %v525 = vsel %vm468, %v453, 0.0
      %v526 = vsel %vm469, %v454, 0.0
      %v527 = vsel %vm470, %v455, 0.0
      %v528 = vsel %vm471, %v520, 0.0
      %v529 = vld [vmem:[#allocation2 + $0x48] sm:$0xff]
      %v530 = vld [vmem:[#allocation2 + $0x49] sm:$0xff]
      %v531 = vsel %vm504, %v489, 0.0
      %v532 = vsel %vm505, %v490, 0.0
      %v533 = vsel %vm506, %v491, 0.0
      %v534 = vsel %vm507, %v492, 0.0
      %v535 = vsel %vm508, %v493, 0.0
      %v536 = vsel %vm509, %v494, 0.0
      %v537 = vsel %vm510, %v495, 0.0
      %v538 = vsel %vm511, %v530, 0.0
      %v539 = vld [vmem:[#allocation2 + $0x4f] sm:$0xff]
      %v540 = vsel %vm464, %v450, 0.0
      %v541 = vsel %vm465, %v451, 0.0
      %v542 = vsel %vm466, %v452, 0.0
      %v543 = vsel %vm467, %v453, 0.0
      %v544 = vsel %vm468, %v454, 0.0
      %v545 = vsel %vm469, %v455, 0.0
      %v546 = vsel %vm470, %v520, 0.0
      %v547 = vsel %vm471, %v539, 0.0
      %v548 = vld [vmem:[#allocation2 + $0x50] sm:$0xff]
      %v549 = vld [vmem:[#allocation2 + $0x51] sm:$0xff]
      %v550 = vsel %vm504, %v490, 0.0
      %v551 = vsel %vm505, %v491, 0.0
      %v552 = vsel %vm506, %v492, 0.0
      %v553 = vsel %vm507, %v493, 0.0
      %v554 = vsel %vm508, %v494, 0.0
      %v555 = vsel %vm509, %v495, 0.0
      %v556 = vsel %vm510, %v530, 0.0
      %v557 = vsel %vm511, %v549, 0.0
      %566 = vrot.lane.b32.xlu0 %v480, 4
      %v567 = vpop.permute.xlu0 %566
      %568 = vrot.lane.b32.xlu0 %v481, 4
      %v569 = vpop.permute.xlu0 %568
      %570 = vrot.lane.b32.xlu0 %v482, 4
      %v571 = vpop.permute.xlu0 %570
      %572 = vrot.lane.b32.xlu0 %v483, 4
      %v573 = vpop.permute.xlu0 %572
      %574 = vrot.lane.b32.xlu0 %v484, 4
      %v575 = vpop.permute.xlu0 %574
      %576 = vrot.lane.b32.xlu0 %v485, 4
      %v577 = vpop.permute.xlu0 %576
      %578 = vrot.lane.b32.xlu0 %v486, 4
      %v579 = vpop.permute.xlu0 %578
      %580 = vrot.lane.b32.xlu0 %v487, 4
      %v581 = vpop.permute.xlu0 %580
      %598 = vrot.lane.b32.xlu0 %v512, 8
      %v599 = vpop.permute.xlu0 %598
      %600 = vrot.lane.b32.xlu0 %v513, 8
      %v601 = vpop.permute.xlu0 %600
      %602 = vrot.lane.b32.xlu0 %v514, 8
      %v603 = vpop.permute.xlu0 %602
      %604 = vrot.lane.b32.xlu0 %v515, 8
      %v605 = vpop.permute.xlu0 %604
      %606 = vrot.lane.b32.xlu0 %v516, 8
      %v607 = vpop.permute.xlu0 %606
      %608 = vrot.lane.b32.xlu0 %v517, 8
      %v609 = vpop.permute.xlu0 %608
      %610 = vrot.lane.b32.xlu0 %v518, 8
      %v611 = vpop.permute.xlu0 %610
      %612 = vrot.lane.b32.xlu0 %v519, 8
      %v613 = vpop.permute.xlu0 %612
      %630 = vrot.lane.b32.xlu0 %v521, 12
      %v631 = vpop.permute.xlu0 %630
      %632 = vrot.lane.b32.xlu0 %v522, 12
      %v633 = vpop.permute.xlu0 %632
      %634 = vrot.lane.b32.xlu0 %v523, 12
      %v635 = vpop.permute.xlu0 %634
      %636 = vrot.lane.b32.xlu0 %v524, 12
      %v637 = vpop.permute.xlu0 %636
      %638 = vrot.lane.b32.xlu0 %v525, 12
      %v639 = vpop.permute.xlu0 %638
      %640 = vrot.lane.b32.xlu0 %v526, 12
      %v641 = vpop.permute.xlu0 %640
      %642 = vrot.lane.b32.xlu0 %v527, 12
      %v643 = vpop.permute.xlu0 %642
      %644 = vrot.lane.b32.xlu0 %v528, 12
      %v645 = vpop.permute.xlu0 %644
      %655 = vrot.lane.b32.xlu0 %v481, 16
      %v656 = vpop.permute.xlu0 %655
      %657 = vrot.lane.b32.xlu0 %v482, 16
      %v658 = vpop.permute.xlu0 %657
      %659 = vrot.lane.b32.xlu0 %v483, 16
      %v660 = vpop.permute.xlu0 %659
      %661 = vrot.lane.b32.xlu0 %v484, 16
      %v662 = vpop.permute.xlu0 %661
      %663 = vrot.lane.b32.xlu0 %v485, 16
      %v664 = vpop.permute.xlu0 %663
      %665 = vrot.lane.b32.xlu0 %v486, 16
      %v666 = vpop.permute.xlu0 %665
      %667 = vrot.lane.b32.xlu0 %v487, 16
      %v668 = vpop.permute.xlu0 %667
      %669 = vrot.lane.b32.xlu0 %v529, 16
      %v670 = vpop.permute.xlu0 %669
      %687 = vrot.lane.b32.xlu0 %v531, 20
      %v688 = vpop.permute.xlu0 %687
      %689 = vrot.lane.b32.xlu0 %v532, 20
      %v690 = vpop.permute.xlu0 %689
      %691 = vrot.lane.b32.xlu0 %v533, 20
      %v692 = vpop.permute.xlu0 %691
      %693 = vrot.lane.b32.xlu0 %v534, 20
      %v694 = vpop.permute.xlu0 %693
      %695 = vrot.lane.b32.xlu0 %v535, 20
      %v696 = vpop.permute.xlu0 %695
      %697 = vrot.lane.b32.xlu0 %v536, 20
      %v698 = vpop.permute.xlu0 %697
      %699 = vrot.lane.b32.xlu0 %v537, 20
      %v700 = vpop.permute.xlu0 %699
      %701 = vrot.lane.b32.xlu0 %v538, 20
      %v702 = vpop.permute.xlu0 %701
      %719 = vrot.lane.b32.xlu0 %v540, 24
      %v720 = vpop.permute.xlu0 %719
      %721 = vrot.lane.b32.xlu0 %v541, 24
      %v722 = vpop.permute.xlu0 %721
      %723 = vrot.lane.b32.xlu0 %v542, 24
      %v724 = vpop.permute.xlu0 %723
      %725 = vrot.lane.b32.xlu0 %v543, 24
      %v726 = vpop.permute.xlu0 %725
      %727 = vrot.lane.b32.xlu0 %v544, 24
      %v728 = vpop.permute.xlu0 %727
      %729 = vrot.lane.b32.xlu0 %v545, 24
      %v730 = vpop.permute.xlu0 %729
      %731 = vrot.lane.b32.xlu0 %v546, 24
      %v732 = vpop.permute.xlu0 %731
      %733 = vrot.lane.b32.xlu0 %v547, 24
      %v734 = vpop.permute.xlu0 %733
      %744 = vrot.lane.b32.xlu0 %v482, 28
      %v745 = vpop.permute.xlu0 %744
      %746 = vrot.lane.b32.xlu0 %v483, 28
      %v747 = vpop.permute.xlu0 %746
      %748 = vrot.lane.b32.xlu0 %v484, 28
      %v749 = vpop.permute.xlu0 %748
      %750 = vrot.lane.b32.xlu0 %v485, 28
      %v751 = vpop.permute.xlu0 %750
      %752 = vrot.lane.b32.xlu0 %v486, 28
      %v753 = vpop.permute.xlu0 %752
      %754 = vrot.lane.b32.xlu0 %v487, 28
      %v755 = vpop.permute.xlu0 %754
      %756 = vrot.lane.b32.xlu0 %v529, 28
      %v757 = vpop.permute.xlu0 %756
      %758 = vrot.lane.b32.xlu0 %v548, 28
      %v759 = vpop.permute.xlu0 %758
      %776 = vrot.lane.b32.xlu0 %v550, 32
      %v777 = vpop.permute.xlu0 %776
      %778 = vrot.lane.b32.xlu0 %v551, 32
      %v779 = vpop.permute.xlu0 %778
      %780 = vrot.lane.b32.xlu0 %v552, 32
      %v781 = vpop.permute.xlu0 %780
      %782 = vrot.lane.b32.xlu0 %v553, 32
      %v783 = vpop.permute.xlu0 %782
      %784 = vrot.lane.b32.xlu0 %v554, 32
      %v785 = vpop.permute.xlu0 %784
      %786 = vrot.lane.b32.xlu0 %v555, 32
      %v787 = vpop.permute.xlu0 %786
      %788 = vrot.lane.b32.xlu0 %v556, 32
      %v789 = vpop.permute.xlu0 %788
      %790 = vrot.lane.b32.xlu0 %v557, 32
      %v791 = vpop.permute.xlu0 %790
      %v800 = vsel %vm435, %v472, %v567
      %v801 = vsel %vm435, %v473, %v569
      %v802 = vsel %vm435, %v474, %v571
      %v803 = vsel %vm435, %v475, %v573
      %v804 = vsel %vm435, %v476, %v575
      %v805 = vsel %vm435, %v477, %v577
      %v806 = vsel %vm435, %v478, %v579
      %v807 = vsel %vm435, %v479, %v581
      %vm808 = vcmask 64512
      %v809 = vsel %vm808, %v800, %v599
      %v810 = vsel %vm808, %v801, %v601
      %v811 = vsel %vm808, %v802, %v603
      %v812 = vsel %vm808, %v803, %v605
      %v813 = vsel %vm808, %v804, %v607
      %v814 = vsel %vm808, %v805, %v609
      %v815 = vsel %vm808, %v806, %v611
      %v816 = vsel %vm808, %v807, %v613
      %vm817 = vcmask 97280
      %v818 = vsel %vm817, %v809, %v631
      %v819 = vsel %vm817, %v810, %v633
      %v820 = vsel %vm817, %v811, %v635
      %v821 = vsel %vm817, %v812, %v637
      %v822 = vsel %vm817, %v813, %v639
      %v823 = vsel %vm817, %v814, %v641
      %v824 = vsel %vm817, %v815, %v643
      %v825 = vsel %vm817, %v816, %v645
      %vm826 = vcmask 130048
      %v827 = vsel %vm826, %v818, %v656
      %v828 = vsel %vm826, %v819, %v658
      %v829 = vsel %vm826, %v820, %v660
      %v830 = vsel %vm826, %v821, %v662
      %v831 = vsel %vm826, %v822, %v664
      %v832 = vsel %vm826, %v823, %v666
      %v833 = vsel %vm826, %v824, %v668
      %v834 = vsel %vm826, %v825, %v670
      %vm835 = vcmask 162816
      %v836 = vsel %vm835, %v827, %v688
      %v837 = vsel %vm835, %v828, %v690
      %v838 = vsel %vm835, %v829, %v692
      %v839 = vsel %vm835, %v830, %v694
      %v840 = vsel %vm835, %v831, %v696
      %v841 = vsel %vm835, %v832, %v698
      %v842 = vsel %vm835, %v833, %v700
      %v843 = vsel %vm835, %v834, %v702
      %vm844 = vcmask 195584
      %v845 = vsel %vm844, %v836, %v720
      %v846 = vsel %vm844, %v837, %v722
      %v847 = vsel %vm844, %v838, %v724
      %v848 = vsel %vm844, %v839, %v726
      %v849 = vsel %vm844, %v840, %v728
      %v850 = vsel %vm844, %v841, %v730
      %v851 = vsel %vm844, %v842, %v732
      %v852 = vsel %vm844, %v843, %v734
      %vm853 = vcmask 228352
      %v854 = vsel %vm853, %v845, %v745
      %v855 = vsel %vm853, %v846, %v747
      %v856 = vsel %vm853, %v847, %v749
      %v857 = vsel %vm853, %v848, %v751
      %v858 = vsel %vm853, %v849, %v753
      %v859 = vsel %vm853, %v850, %v755
      %v860 = vsel %vm853, %v851, %v757
      %v861 = vsel %vm853, %v852, %v759
      %vm862 = vcmask 261120
      %v863 = vsel %vm862, %v854, %v777
      %v864 = vsel %vm862, %v855, %v779
      %v865 = vsel %vm862, %v856, %v781
      %v866 = vsel %vm862, %v857, %v783
      %v867 = vsel %vm862, %v858, %v785
      %v868 = vsel %vm862, %v859, %v787
      %v869 = vsel %vm862, %v860, %v789
      %v870 = vsel %vm862, %v861, %v791
      %v871 = vpack.c.bf16 %v864, %v863
      %v872 = vpack.c.bf16 %v866, %v865
      %v873 = vpack.c.bf16 %v868, %v867
      %v874 = vpack.c.bf16 %v870, %v869
      %v875 = vld [vmem:[%s1] sm:$0xf]
      %v876 = vld [vmem:[%s1 + $0x4] sm:$0xf]
      %v877 = vld [vmem:[%s1 + $0x8] sm:$0xf]
      %v878 = vld [vmem:[%s1 + $0xc] sm:$0xf]
      %v879 = vld [vmem:[%s1 + $0x10] sm:$0x3]
      %v880 = vld [vmem:[%s2] sm:$0x1]
      %v882 = vlaneseq
      %v883 = vshrl.u32 %v882, 7
      %v884 = vsub.s32 0, %v883
      %v885 = vrot.slane %v880, %v884
      %v892 = vunpack.c.l.b16 %v875
      %v893 = vunpack.c.l.b16 %v876
      %v894 = vunpack.c.l.b16 %v877
      %v895 = vunpack.c.l.b16 %v878
      %v896 = vunpack.c.l.b16 %v879
      %v897 = vpack.c.b16 %v893, %v892
      %v898 = vpack.c.b16 %v895, %v894
      %v899 = vpack.c.b16 %v896, %v896
      %vm902 = vcmask 293888
      %v904 = vsel %vm902, %v871, 0
      %v907 = vsel %vm902, %v872, 0
      %v910 = vsel %vm902, %v873, 0
      %v913 = vsel %vm902, %v874, 0
      %vm915 = vcmask 1041408
      %v917 = vsel %vm915, %v899, 0
      %919 = vmatprep.subr.bf16.mxu0 0
      %920 = vmatpush1.bf16.msra.mxu0 %v897
      %921 = vmatprep.subr.bf16.mxu0 0
      %922 = vmatpush1.bf16.msra.mxu0 %v898
      %923 = vmatprep.subr.bf16.mxu0 0
      %924 = vmatpush1.bf16.msra.mxu0 %v917
      %925 = vmatprep.subr.bf16.mxu0 0
      %926 = vmatpush1.bf16.msra.mxu0 0
      %927 = vmatprep.subr.bf16.mxu0 0
      %928 = vmatpush1.bf16.msra.mxu0 0
      %929 = vmatprep.subr.bf16.mxu0 0
      %930 = vmatpush1.bf16.msra.mxu0 0
      %931 = vmatprep.subr.bf16.mxu0 0
      %932 = vmatpush1.bf16.msra.mxu0 0
      %933 = vmatprep.subr.bf16.mxu0 0
      %934 = vmatpush1.bf16.msra.mxu0 0
      %935 = vmatprep.subr.bf16.mxu0 0
      %936 = vmatpush1.bf16.msra.mxu0 0
      %937 = vmatprep.subr.bf16.mxu0 0
      %938 = vmatpush1.bf16.msra.mxu0 0
      %939 = vmatprep.subr.bf16.mxu0 0
      %940 = vmatpush1.bf16.msra.mxu0 0
      %941 = vmatprep.subr.bf16.mxu0 0
      %942 = vmatpush1.bf16.msra.mxu0 0
      %943 = vmatprep.subr.bf16.mxu0 0
      %944 = vmatpush1.bf16.msra.mxu0 0
      %945 = vmatprep.subr.bf16.mxu0 0
      %946 = vmatpush1.bf16.msra.mxu0 0
      %947 = vmatprep.subr.bf16.mxu0 0
      %948 = vmatpush1.bf16.msra.mxu0 0
      %949 = vmatprep.subr.bf16.mxu0 0
      %950 = vmatpush1.bf16.msra.mxu0 0
      %951 = vmatprep.mubr.bf16.mxu0 0
      %952 = vmatmul.mubr.bf16.gmra.mrb[0].mxu0 %v904
      %v953 = vpop.f32.mrb[0].mxu0
      %v954 = vadd.f32 %v885, %v953
      %v955 = vpop.f32.mrb[0].mxu0
      %v956 = vpop.f32.mrb[0].mxu0
      %v957 = vadd.f32 %v885, %v956
      %v958 = vpop.f32.mrb[0].mxu0
      %959 = vmatprep.mubr.bf16.mxu0 0
      %960 = vmatmul.mubr.bf16.gmra.mrb[0].mxu0 %v907
      %v961 = vpop.f32.mrb[0].mxu0
      %v962 = vadd.f32 %v885, %v961
      %v963 = vpop.f32.mrb[0].mxu0
      %v964 = vpop.f32.mrb[0].mxu0
      %v965 = vadd.f32 %v885, %v964
      %v966 = vpop.f32.mrb[0].mxu0
      %967 = vmatprep.mubr.bf16.mxu0 0
      %968 = vmatmul.mubr.bf16.gmra.mrb[0].mxu0 %v910
      %v969 = vpop.f32.mrb[0].mxu0
      %v970 = vadd.f32 %v885, %v969
      %v971 = vpop.f32.mrb[0].mxu0
      %v972 = vpop.f32.mrb[0].mxu0
      %v973 = vadd.f32 %v885, %v972
      %v974 = vpop.f32.mrb[0].mxu0
      %975 = vmatprep.mubr.bf16.mxu0 0
      %976 = vmatmul.mubr.bf16.gmra.mrb[0].mxu0 %v913
      %v977 = vpop.f32.mrb[0].mxu0
      %v978 = vadd.f32 %v885, %v977
      %v979 = vpop.f32.mrb[0].mxu0
      %v980 = vpop.f32.mrb[0].mxu0
      %v981 = vadd.f32 %v885, %v980
      %v982 = vpop.f32.mrb[0].mxu0
      %983 = vdwg.mxu0
      %vm984 = vcmp.gt.f32.partialorder %v954, 0.0
      %vm985 = vcmp.gt.f32.partialorder %v957, 0.0
      %vm986 = vcmp.gt.f32.partialorder %v962, 0.0
      %vm987 = vcmp.gt.f32.partialorder %v965, 0.0
      %vm988 = vcmp.gt.f32.partialorder %v970, 0.0
      %vm989 = vcmp.gt.f32.partialorder %v973, 0.0
      %vm990 = vcmp.gt.f32.partialorder %v978, 0.0
      %vm991 = vcmp.gt.f32.partialorder %v981, 0.0
      %v992 = vmul.f32 %v954, 0.01
      %v993 = vmul.f32 %v957, 0.01
      %v994 = vmul.f32 %v962, 0.01
      %v995 = vmul.f32 %v965, 0.01
      %v996 = vmul.f32 %v970, 0.01
      %v997 = vmul.f32 %v973, 0.01
      %v998 = vmul.f32 %v978, 0.01
      %v999 = vmul.f32 %v981, 0.01
      %v1000 = vsel %vm984, %v954, %v992
      %v1001 = vsel %vm985, %v957, %v993
      %v1002 = vsel %vm986, %v962, %v994
      %v1003 = vsel %vm987, %v965, %v995
      %v1004 = vsel %vm988, %v970, %v996
      %v1005 = vsel %vm989, %v973, %v997
      %v1006 = vsel %vm990, %v978, %v998
      %v1007 = vsel %vm991, %v981, %v999
      %1008 = vst.msk [vmem:[#allocation3] sm:$0xff] %vm808, 0.0
      %1009 = vst.msk [vmem:[#allocation3 + $0x8] sm:$0xff] %vm808, 0.0
      %1010 = vst.msk [vmem:[#allocation3 + $0x50] sm:$0xff] %vm808, 0.0
      %1011 = vst.msk [vmem:[#allocation3 + $0x58] sm:$0xff] %vm808, 0.0
      %1012 = vst.msk [vmem:[#allocation3 + $0x10] sm:$0xff] %vm808, %v1000
      %1013 = vst.msk [vmem:[#allocation3 + $0x18] sm:$0xff] %vm808, %v1001
      %1014 = vst.msk [vmem:[#allocation3 + $0x20] sm:$0xff] %vm808, %v1002
      %1015 = vst.msk [vmem:[#allocation3 + $0x28] sm:$0xff] %vm808, %v1003
      %1016 = vst.msk [vmem:[#allocation3 + $0x30] sm:$0xff] %vm808, %v1004
      %1017 = vst.msk [vmem:[#allocation3 + $0x38] sm:$0xff] %vm808, %v1005
      %1018 = vst.msk [vmem:[#allocation3 + $0x40] sm:$0xff] %vm808, %v1006
      %1019 = vst.msk [vmem:[#allocation3 + $0x48] sm:$0xff] %vm808, %v1007
      %v1020 = vld [vmem:[#allocation3 + $0x7] sm:$0xff]
      %v1021 = vld [vmem:[#allocation3 + $0xf] sm:$0xff]
      %v1022 = vld [vmem:[#allocation3 + $0x17] sm:$0xff]
      %v1023 = vld [vmem:[#allocation3 + $0x1f] sm:$0xff]
      %v1024 = vld [vmem:[#allocation3 + $0x27] sm:$0xff]
      %v1025 = vld [vmem:[#allocation3 + $0x2f] sm:$0xff]
      %v1026 = vld [vmem:[#allocation3 + $0x37] sm:$0xff]
      %v1027 = vld [vmem:[#allocation3 + $0x3f] sm:$0xff]
      %v1028 = vsel %vm464, %v1020, 0.0
      %v1029 = vsel %vm465, %v1021, 0.0
      %v1030 = vsel %vm466, %v1022, 0.0
      %v1031 = vsel %vm467, %v1023, 0.0
      %v1032 = vsel %vm468, %v1024, 0.0
      %v1033 = vsel %vm469, %v1025, 0.0
      %v1034 = vsel %vm470, %v1026, 0.0
      %v1035 = vsel %vm471, %v1027, 0.0
      %v1036 = vld [vmem:[#allocation3 + $0x8] sm:$0xff]
      %v1037 = vld [vmem:[#allocation3 + $0x10] sm:$0xff]
      %v1038 = vld [vmem:[#allocation3 + $0x18] sm:$0xff]
      %v1039 = vld [vmem:[#allocation3 + $0x20] sm:$0xff]
      %v1040 = vld [vmem:[#allocation3 + $0x28] sm:$0xff]
      %v1041 = vld [vmem:[#allocation3 + $0x30] sm:$0xff]
      %v1042 = vld [vmem:[#allocation3 + $0x38] sm:$0xff]
      %v1043 = vld [vmem:[#allocation3 + $0x40] sm:$0xff]
      %v1044 = vld [vmem:[#allocation3 + $0x9] sm:$0xff]
      %v1045 = vld [vmem:[#allocation3 + $0x11] sm:$0xff]
      %v1046 = vld [vmem:[#allocation3 + $0x19] sm:$0xff]
      %v1047 = vld [vmem:[#allocation3 + $0x21] sm:$0xff]
      %v1048 = vld [vmem:[#allocation3 + $0x29] sm:$0xff]
      %v1049 = vld [vmem:[#allocation3 + $0x31] sm:$0xff]
      %v1050 = vld [vmem:[#allocation3 + $0x39] sm:$0xff]
      %v1051 = vld [vmem:[#allocation3 + $0x41] sm:$0xff]
      %v1052 = vsel %vm504, %v1044, 0.0
      %v1053 = vsel %vm505, %v1045, 0.0
      %v1054 = vsel %vm506, %v1046, 0.0
      %v1055 = vsel %vm507, %v1047, 0.0
      %v1056 = vsel %vm508, %v1048, 0.0
      %v1057 = vsel %vm509, %v1049, 0.0
      %v1058 = vsel %vm510, %v1050, 0.0
      %v1059 = vsel %vm511, %v1051, 0.0
      %v1060 = vld [vmem:[#allocation3 + $0x47] sm:$0xff]
      %v1061 = vsel %vm464, %v1021, 0.0
      %v1062 = vsel %vm465, %v1022, 0.0
      %v1063 = vsel %vm466, %v1023, 0.0
      %v1064 = vsel %vm467, %v1024, 0.0
      %v1065 = vsel %vm468, %v1025, 0.0
      %v1066 = vsel %vm469, %v1026, 0.0
      %v1067 = vsel %vm470, %v1027, 0.0
      %v1068 = vsel %vm471, %v1060, 0.0
      %v1069 = vld [vmem:[#allocation3 + $0x48] sm:$0xff]
      %v1070 = vld [vmem:[#allocation3 + $0x49] sm:$0xff]
      %v1071 = vsel %vm504, %v1045, 0.0
      %v1072 = vsel %vm505, %v1046, 0.0
      %v1073 = vsel %vm506, %v1047, 0.0
      %v1074 = vsel %vm507, %v1048, 0.0
      %v1075 = vsel %vm508, %v1049, 0.0
      %v1076 = vsel %vm509, %v1050, 0.0
      %v1077 = vsel %vm510, %v1051, 0.0
      %v1078 = vsel %vm511, %v1070, 0.0
      %v1079 = vld [vmem:[#allocation3 + $0x4f] sm:$0xff]
      %v1080 = vsel %vm464, %v1022, 0.0
      %v1081 = vsel %vm465, %v1023, 0.0
      %v1082 = vsel %vm466, %v1024, 0.0
      %v1083 = vsel %vm467, %v1025, 0.0
      %v1084 = vsel %vm468, %v1026, 0.0
      %v1085 = vsel %vm469, %v1027, 0.0
      %v1086 = vsel %vm470, %v1060, 0.0
      %v1087 = vsel %vm471, %v1079, 0.0
      %v1088 = vld [vmem:[#allocation3 + $0x50] sm:$0xff]
      %v1089 = vld [vmem:[#allocation3 + $0x51] sm:$0xff]
      %v1090 = vsel %vm504, %v1046, 0.0
      %v1091 = vsel %vm505, %v1047, 0.0
      %v1092 = vsel %vm506, %v1048, 0.0
      %v1093 = vsel %vm507, %v1049, 0.0
      %v1094 = vsel %vm508, %v1050, 0.0
      %v1095 = vsel %vm509, %v1051, 0.0
      %v1096 = vsel %vm510, %v1070, 0.0
      %v1097 = vsel %vm511, %v1089, 0.0
      %1106 = vrot.lane.b32.xlu0 %v1036, 8
      %v1107 = vpop.permute.xlu0 %1106
      %1108 = vrot.lane.b32.xlu0 %v1037, 8
      %v1109 = vpop.permute.xlu0 %1108
      %1110 = vrot.lane.b32.xlu0 %v1038, 8
      %v1111 = vpop.permute.xlu0 %1110
      %1112 = vrot.lane.b32.xlu0 %v1039, 8
      %v1113 = vpop.permute.xlu0 %1112
      %1114 = vrot.lane.b32.xlu0 %v1040, 8
      %v1115 = vpop.permute.xlu0 %1114
      %1116 = vrot.lane.b32.xlu0 %v1041, 8
      %v1117 = vpop.permute.xlu0 %1116
      %1118 = vrot.lane.b32.xlu0 %v1042, 8
      %v1119 = vpop.permute.xlu0 %1118
      %1120 = vrot.lane.b32.xlu0 %v1043, 8
      %v1121 = vpop.permute.xlu0 %1120
      %1138 = vrot.lane.b32.xlu0 %v1052, 16
      %v1139 = vpop.permute.xlu0 %1138
      %1140 = vrot.lane.b32.xlu0 %v1053, 16
      %v1141 = vpop.permute.xlu0 %1140
      %1142 = vrot.lane.b32.xlu0 %v1054, 16
      %v1143 = vpop.permute.xlu0 %1142
      %1144 = vrot.lane.b32.xlu0 %v1055, 16
      %v1145 = vpop.permute.xlu0 %1144
      %1146 = vrot.lane.b32.xlu0 %v1056, 16
      %v1147 = vpop.permute.xlu0 %1146
      %1148 = vrot.lane.b32.xlu0 %v1057, 16
      %v1149 = vpop.permute.xlu0 %1148
      %1150 = vrot.lane.b32.xlu0 %v1058, 16
      %v1151 = vpop.permute.xlu0 %1150
      %1152 = vrot.lane.b32.xlu0 %v1059, 16
      %v1153 = vpop.permute.xlu0 %1152
      %1170 = vrot.lane.b32.xlu0 %v1061, 24
      %v1171 = vpop.permute.xlu0 %1170
      %1172 = vrot.lane.b32.xlu0 %v1062, 24
      %v1173 = vpop.permute.xlu0 %1172
      %1174 = vrot.lane.b32.xlu0 %v1063, 24
      %v1175 = vpop.permute.xlu0 %1174
      %1176 = vrot.lane.b32.xlu0 %v1064, 24
      %v1177 = vpop.permute.xlu0 %1176
      %1178 = vrot.lane.b32.xlu0 %v1065, 24
      %v1179 = vpop.permute.xlu0 %1178
      %1180 = vrot.lane.b32.xlu0 %v1066, 24
      %v1181 = vpop.permute.xlu0 %1180
      %1182 = vrot.lane.b32.xlu0 %v1067, 24
      %v1183 = vpop.permute.xlu0 %1182
      %1184 = vrot.lane.b32.xlu0 %v1068, 24
      %v1185 = vpop.permute.xlu0 %1184
      %1195 = vrot.lane.b32.xlu0 %v1037, 32
      %v1196 = vpop.permute.xlu0 %1195
      %1197 = vrot.lane.b32.xlu0 %v1038, 32
      %v1198 = vpop.permute.xlu0 %1197
      %1199 = vrot.lane.b32.xlu0 %v1039, 32
      %v1200 = vpop.permute.xlu0 %1199
      %1201 = vrot.lane.b32.xlu0 %v1040, 32
      %v1202 = vpop.permute.xlu0 %1201
      %1203 = vrot.lane.b32.xlu0 %v1041, 32
      %v1204 = vpop.permute.xlu0 %1203
      %1205 = vrot.lane.b32.xlu0 %v1042, 32
      %v1206 = vpop.permute.xlu0 %1205
      %1207 = vrot.lane.b32.xlu0 %v1043, 32
      %v1208 = vpop.permute.xlu0 %1207
      %1209 = vrot.lane.b32.xlu0 %v1069, 32
      %v1210 = vpop.permute.xlu0 %1209
      %1227 = vrot.lane.b32.xlu0 %v1071, 40
      %v1228 = vpop.permute.xlu0 %1227
      %1229 = vrot.lane.b32.xlu0 %v1072, 40
      %v1230 = vpop.permute.xlu0 %1229
      %1231 = vrot.lane.b32.xlu0 %v1073, 40
      %v1232 = vpop.permute.xlu0 %1231
      %1233 = vrot.lane.b32.xlu0 %v1074, 40
      %v1234 = vpop.permute.xlu0 %1233
      %1235 = vrot.lane.b32.xlu0 %v1075, 40
      %v1236 = vpop.permute.xlu0 %1235
      %1237 = vrot.lane.b32.xlu0 %v1076, 40
      %v1238 = vpop.permute.xlu0 %1237
      %1239 = vrot.lane.b32.xlu0 %v1077, 40
      %v1240 = vpop.permute.xlu0 %1239
      %1241 = vrot.lane.b32.xlu0 %v1078, 40
      %v1242 = vpop.permute.xlu0 %1241
      %1259 = vrot.lane.b32.xlu0 %v1080, 48
      %v1260 = vpop.permute.xlu0 %1259
      %1261 = vrot.lane.b32.xlu0 %v1081, 48
      %v1262 = vpop.permute.xlu0 %1261
      %1263 = vrot.lane.b32.xlu0 %v1082, 48
      %v1264 = vpop.permute.xlu0 %1263
      %1265 = vrot.lane.b32.xlu0 %v1083, 48
      %v1266 = vpop.permute.xlu0 %1265
      %1267 = vrot.lane.b32.xlu0 %v1084, 48
      %v1268 = vpop.permute.xlu0 %1267
      %1269 = vrot.lane.b32.xlu0 %v1085, 48
      %v1270 = vpop.permute.xlu0 %1269
      %1271 = vrot.lane.b32.xlu0 %v1086, 48
      %v1272 = vpop.permute.xlu0 %1271
      %1273 = vrot.lane.b32.xlu0 %v1087, 48
      %v1274 = vpop.permute.xlu0 %1273
      %1284 = vrot.lane.b32.xlu0 %v1038, 56
      %v1285 = vpop.permute.xlu0 %1284
      %1286 = vrot.lane.b32.xlu0 %v1039, 56
      %v1287 = vpop.permute.xlu0 %1286
      %1288 = vrot.lane.b32.xlu0 %v1040, 56
      %v1289 = vpop.permute.xlu0 %1288
      %1290 = vrot.lane.b32.xlu0 %v1041, 56
      %v1291 = vpop.permute.xlu0 %1290
      %1292 = vrot.lane.b32.xlu0 %v1042, 56
      %v1293 = vpop.permute.xlu0 %1292
      %1294 = vrot.lane.b32.xlu0 %v1043, 56
      %v1295 = vpop.permute.xlu0 %1294
      %1296 = vrot.lane.b32.xlu0 %v1069, 56
      %v1297 = vpop.permute.xlu0 %1296
      %1298 = vrot.lane.b32.xlu0 %v1088, 56
      %v1299 = vpop.permute.xlu0 %1298
      %1316 = vrot.lane.b32.xlu0 %v1090, 64
      %v1317 = vpop.permute.xlu0 %1316
      %1318 = vrot.lane.b32.xlu0 %v1091, 64
      %v1319 = vpop.permute.xlu0 %1318
      %1320 = vrot.lane.b32.xlu0 %v1092, 64
      %v1321 = vpop.permute.xlu0 %1320
      %1322 = vrot.lane.b32.xlu0 %v1093, 64
      %v1323 = vpop.permute.xlu0 %1322
      %1324 = vrot.lane.b32.xlu0 %v1094, 64
      %v1325 = vpop.permute.xlu0 %1324
      %1326 = vrot.lane.b32.xlu0 %v1095, 64
      %v1327 = vpop.permute.xlu0 %1326
      %1328 = vrot.lane.b32.xlu0 %v1096, 64
      %v1329 = vpop.permute.xlu0 %1328
      %1330 = vrot.lane.b32.xlu0 %v1097, 64
      %v1331 = vpop.permute.xlu0 %1330
      %v1340 = vsel %vm808, %v1028, %v1107
      %v1341 = vsel %vm808, %v1029, %v1109
      %v1342 = vsel %vm808, %v1030, %v1111
      %v1343 = vsel %vm808, %v1031, %v1113
      %v1344 = vsel %vm808, %v1032, %v1115
      %v1345 = vsel %vm808, %v1033, %v1117
      %v1346 = vsel %vm808, %v1034, %v1119
      %v1347 = vsel %vm808, %v1035, %v1121
      %v1348 = vsel %vm826, %v1340, %v1139
      %v1349 = vsel %vm826, %v1341, %v1141
      %v1350 = vsel %vm826, %v1342, %v1143
      %v1351 = vsel %vm826, %v1343, %v1145
      %v1352 = vsel %vm826, %v1344, %v1147
      %v1353 = vsel %vm826, %v1345, %v1149
      %v1354 = vsel %vm826, %v1346, %v1151
      %v1355 = vsel %vm826, %v1347, %v1153
      %v1356 = vsel %vm844, %v1348, %v1171
      %v1357 = vsel %vm844, %v1349, %v1173
      %v1358 = vsel %vm844, %v1350, %v1175
      %v1359 = vsel %vm844, %v1351, %v1177
      %v1360 = vsel %vm844, %v1352, %v1179
      %v1361 = vsel %vm844, %v1353, %v1181
      %v1362 = vsel %vm844, %v1354, %v1183
      %v1363 = vsel %vm844, %v1355, %v1185
      %v1364 = vsel %vm862, %v1356, %v1196
      %v1365 = vsel %vm862, %v1357, %v1198
      %v1366 = vsel %vm862, %v1358, %v1200
      %v1367 = vsel %vm862, %v1359, %v1202
      %v1368 = vsel %vm862, %v1360, %v1204
      %v1369 = vsel %vm862, %v1361, %v1206
      %v1370 = vsel %vm862, %v1362, %v1208
      %v1371 = vsel %vm862, %v1363, %v1210
      %vm1372 = vcmask 326656
      %v1373 = vsel %vm1372, %v1364, %v1228
      %v1374 = vsel %vm1372, %v1365, %v1230
      %v1375 = vsel %vm1372, %v1366, %v1232
      %v1376 = vsel %vm1372, %v1367, %v1234
      %v1377 = vsel %vm1372, %v1368, %v1236
      %v1378 = vsel %vm1372, %v1369, %v1238
      %v1379 = vsel %vm1372, %v1370, %v1240
      %v1380 = vsel %vm1372, %v1371, %v1242
      %vm1381 = vcmask 392192
      %v1382 = vsel %vm1381, %v1373, %v1260
      %v1383 = vsel %vm1381, %v1374, %v1262
      %v1384 = vsel %vm1381, %v1375, %v1264
      %v1385 = vsel %vm1381, %v1376, %v1266
      %v1386 = vsel %vm1381, %v1377, %v1268
      %v1387 = vsel %vm1381, %v1378, %v1270
      %v1388 = vsel %vm1381, %v1379, %v1272
      %v1389 = vsel %vm1381, %v1380, %v1274
      %vm1390 = vcmask 457728
      %v1391 = vsel %vm1390, %v1382, %v1285
      %v1392 = vsel %vm1390, %v1383, %v1287
      %v1393 = vsel %vm1390, %v1384, %v1289
      %v1394 = vsel %vm1390, %v1385, %v1291
      %v1395 = vsel %vm1390, %v1386, %v1293
      %v1396 = vsel %vm1390, %v1387, %v1295
      %v1397 = vsel %vm1390, %v1388, %v1297
      %v1398 = vsel %vm1390, %v1389, %v1299
      %vm1399 = vcmask 523264
      %v1400 = vsel %vm1399, %v1391, %v1317
      %v1401 = vsel %vm1399, %v1392, %v1319
      %v1402 = vsel %vm1399, %v1393, %v1321
      %v1403 = vsel %vm1399, %v1394, %v1323
      %v1404 = vsel %vm1399, %v1395, %v1325
      %v1405 = vsel %vm1399, %v1396, %v1327
      %v1406 = vsel %vm1399, %v1397, %v1329
      %v1407 = vsel %vm1399, %v1398, %v1331
      %v1408 = vpack.c.bf16 %v1401, %v1400
      %v1409 = vpack.c.bf16 %v1403, %v1402
      %v1410 = vpack.c.bf16 %v1405, %v1404
      %v1411 = vpack.c.bf16 %v1407, %v1406
      %v1412 = vld [vmem:[%s3] sm:$0xf]
      %v1413 = vld [vmem:[%s3 + $0x4] sm:$0xf]
      %v1414 = vld [vmem:[%s3 + $0x8] sm:$0xf]
      %v1415 = vld [vmem:[%s3 + $0xc] sm:$0xf]
      %v1416 = vld [vmem:[%s3 + $0x10] sm:$0xf]
      %v1417 = vld [vmem:[%s3 + $0x14] sm:$0xf]
      %v1418 = vld [vmem:[%s3 + $0x18] sm:$0xf]
      %v1419 = vld [vmem:[%s3 + $0x1c] sm:$0xf]
      %v1420 = vld [vmem:[%s3 + $0x20] sm:$0xf]
      %v1421 = vld [vmem:[%s4] sm:$0x1]
      %v1423 = vlaneseq
      %v1424 = vshrl.u32 %v1423, 7
      %v1425 = vsub.s32 0, %v1424
      %v1426 = vrot.slane %v1421, %v1425
      %v1437 = vunpack.c.l.b16 %v1412
      %v1438 = vunpack.c.l.b16 %v1413
      %v1439 = vunpack.c.l.b16 %v1414
      %v1440 = vunpack.c.l.b16 %v1415
      %v1441 = vunpack.c.l.b16 %v1416
      %v1442 = vunpack.c.l.b16 %v1417
      %v1443 = vunpack.c.l.b16 %v1418
      %v1444 = vunpack.c.l.b16 %v1419
      %v1445 = vunpack.c.l.b16 %v1420
      %v1446 = vpack.c.b16 %v1438, %v1437
      %v1447 = vpack.c.b16 %v1440, %v1439
      %v1448 = vpack.c.b16 %v1442, %v1441
      %v1449 = vpack.c.b16 %v1444, %v1443
      %v1450 = vpack.c.b16 %v1445, %v1445
      %vm1455 = vcmask 588800
      %v1457 = vsel %vm1455, %v1408, 0
      %v1460 = vsel %vm1455, %v1409, 0
      %v1463 = vsel %vm1455, %v1410, 0
      %v1466 = vsel %vm1455, %v1411, 0
      %vm1468 = vcmask 1043456
      %v1470 = vsel %vm1468, %v1450, 0
      %1472 = vmatprep.subr.bf16.mxu0 0
      %1473 = vmatpush1.bf16.msra.mxu0 %v1446
      %1474 = vmatprep.subr.bf16.mxu0 0
      %1475 = vmatpush1.bf16.msra.mxu0 %v1447
      %1476 = vmatprep.subr.bf16.mxu0 0
      %1477 = vmatpush1.bf16.msra.mxu0 %v1448
      %1478 = vmatprep.subr.bf16.mxu0 0
      %1479 = vmatpush1.bf16.msra.mxu0 %v1449
      %1480 = vmatprep.subr.bf16.mxu0 0
      %1481 = vmatpush1.bf16.msra.mxu0 %v1470
      %1482 = vmatprep.subr.bf16.mxu0 0
      %1483 = vmatpush1.bf16.msra.mxu0 0
      %1484 = vmatprep.subr.bf16.mxu0 0
      %1485 = vmatpush1.bf16.msra.mxu0 0
      %1486 = vmatprep.subr.bf16.mxu0 0
      %1487 = vmatpush1.bf16.msra.mxu0 0
      %1488 = vmatprep.subr.bf16.mxu0 0
      %1489 = vmatpush1.bf16.msra.mxu0 0
      %1490 = vmatprep.subr.bf16.mxu0 0
      %1491 = vmatpush1.bf16.msra.mxu0 0
      %1492 = vmatprep.subr.bf16.mxu0 0
      %1493 = vmatpush1.bf16.msra.mxu0 0
      %1494 = vmatprep.subr.bf16.mxu0 0
      %1495 = vmatpush1.bf16.msra.mxu0 0
      %1496 = vmatprep.subr.bf16.mxu0 0
      %1497 = vmatpush1.bf16.msra.mxu0 0
      %1498 = vmatprep.subr.bf16.mxu0 0
      %1499 = vmatpush1.bf16.msra.mxu0 0
      %1500 = vmatprep.subr.bf16.mxu0 0
      %1501 = vmatpush1.bf16.msra.mxu0 0
      %1502 = vmatprep.subr.bf16.mxu0 0
      %1503 = vmatpush1.bf16.msra.mxu0 0
      %1504 = vmatprep.mubr.bf16.mxu0 0
      %1505 = vmatmul.mubr.bf16.gmra.mrb[0].mxu0 %v1457
      %v1506 = vpop.f32.mrb[0].mxu0
      %v1507 = vadd.f32 %v1426, %v1506
      %v1508 = vpop.f32.mrb[0].mxu0
      %v1509 = vpop.f32.mrb[0].mxu0
      %v1510 = vadd.f32 %v1426, %v1509
      %v1511 = vpop.f32.mrb[0].mxu0
      %1512 = vmatprep.mubr.bf16.mxu0 0
      %1513 = vmatmul.mubr.bf16.gmra.mrb[0].mxu0 %v1460
      %v1514 = vpop.f32.mrb[0].mxu0
      %v1515 = vadd.f32 %v1426, %v1514
      %v1516 = vpop.f32.mrb[0].mxu0
      %v1517 = vpop.f32.mrb[0].mxu0
      %v1518 = vadd.f32 %v1426, %v1517
      %v1519 = vpop.f32.mrb[0].mxu0
      %1520 = vmatprep.mubr.bf16.mxu0 0
      %1521 = vmatmul.mubr.bf16.gmra.mrb[0].mxu0 %v1463
      %v1522 = vpop.f32.mrb[0].mxu0
      %v1523 = vadd.f32 %v1426, %v1522
      %v1524 = vpop.f32.mrb[0].mxu0
      %v1525 = vpop.f32.mrb[0].mxu0
      %v1526 = vadd.f32 %v1426, %v1525
      %v1527 = vpop.f32.mrb[0].mxu0
      %1528 = vmatprep.mubr.bf16.mxu0 0
      %1529 = vmatmul.mubr.bf16.gmra.mrb[0].mxu0 %v1466
      %v1530 = vpop.f32.mrb[0].mxu0
      %v1531 = vadd.f32 %v1426, %v1530
      %v1532 = vpop.f32.mrb[0].mxu0
      %v1533 = vpop.f32.mrb[0].mxu0
      %v1534 = vadd.f32 %v1426, %v1533
      %v1535 = vpop.f32.mrb[0].mxu0
      %1536 = vdwg.mxu0
      %vm1537 = vcmp.gt.f32.partialorder %v1507, 0.0
      %vm1538 = vcmp.gt.f32.partialorder %v1510, 0.0
      %vm1539 = vcmp.gt.f32.partialorder %v1515, 0.0
      %vm1540 = vcmp.gt.f32.partialorder %v1518, 0.0
      %vm1541 = vcmp.gt.f32.partialorder %v1523, 0.0
      %vm1542 = vcmp.gt.f32.partialorder %v1526, 0.0
      %vm1543 = vcmp.gt.f32.partialorder %v1531, 0.0
      %vm1544 = vcmp.gt.f32.partialorder %v1534, 0.0
      %v1545 = vmul.f32 %v1507, 0.01
      %v1546 = vmul.f32 %v1510, 0.01
      %v1547 = vmul.f32 %v1515, 0.01
      %v1548 = vmul.f32 %v1518, 0.01
      %v1549 = vmul.f32 %v1523, 0.01
      %v1550 = vmul.f32 %v1526, 0.01
      %v1551 = vmul.f32 %v1531, 0.01
      %v1552 = vmul.f32 %v1534, 0.01
      %v1553 = vsel %vm1537, %v1507, %v1545
      %v1554 = vsel %vm1538, %v1510, %v1546
      %v1555 = vsel %vm1539, %v1515, %v1547
      %v1556 = vsel %vm1540, %v1518, %v1548
      %v1557 = vsel %vm1541, %v1523, %v1549
      %v1558 = vsel %vm1542, %v1526, %v1550
      %v1559 = vsel %vm1543, %v1531, %v1551
      %v1560 = vsel %vm1544, %v1534, %v1552
      %1561 = vst.msk [vmem:[%s224] sm:$0xff] %vm808, %v1553
      %1562 = vst.msk [vmem:[%s224 + $0x8] sm:$0xff] %vm808, %v1554
      %1563 = vst.msk [vmem:[%s224 + $0x10] sm:$0xff] %vm808, %v1555
      %1564 = vst.msk [vmem:[%s224 + $0x18] sm:$0xff] %vm808, %v1556
      %1565 = vst.msk [vmem:[%s224 + $0x20] sm:$0xff] %vm808, %v1557
      %1566 = vst.msk [vmem:[%s224 + $0x28] sm:$0xff] %vm808, %v1558
      %1567 = vst.msk [vmem:[%s224 + $0x30] sm:$0xff] %vm808, %v1559
      %1568 = vst.msk [vmem:[%s224 + $0x38] sm:$0xff] %vm808, %v1560
      %p1569 = scmp.lt.s32.totalorder %s16, 1
      %s1570 = scalar_select %p1569, %s16, 1
      %s1571 = smul.addr %s1570, 8
      %s1572 = smul.addr %s1571, 8
      %s1573 = scalar_lea.vmem %s5, %s1572
      // Predicated region
      $region41: #{down_forward.1} parent=39 // pred_check
        %p1574 = pneg %p144
      $region42: #{down_forward.1} parent=39 // pred_check_branch
        %1576 = sbr.rel (%p1574) target = $region44
      $region43: #{down_forward.1} parent=39 // pred_region
        _
      $region44: #{down_forward.1} parent=39 // pred_fallthru
        _
    $region40: #{down_forward.1} parent=5 // pred_fallthru
      _
    %p1577 = scmp.le.s32.totalorder 2, %s11
    // Predicated region
    $region45: #{down_forward.1} parent=5 // pred_check
      %p1578 = pneg %p1577
    $region46: #{down_forward.1} parent=5 // pred_check_branch
      %1580 = sbr.rel (%p1578) target = $region48
    $region47: #{down_forward.1} parent=5 // pred_region
      %s1581 = ssub.s32 %s11, 2
      // Predicated region
      $region49: #{down_forward.1} parent=47 // pred_check
        %p1582 = pneg %p150
      $region50: #{down_forward.1} parent=47 // pred_check_branch
        %1584 = sbr.rel (%p1582) target = $region52
      $region51: #{down_forward.1} parent=47 // pred_region
        %p1585 = scmp.lt.s32.totalorder %s17, 1
        %s1586 = scalar_select %p1585, %s17, 1
        %s1587 = smul.addr %s1586, 8
        %s1588 = smul.addr %s1587, 8
        %s1589 = scalar_lea.vmem %s5, %s1588
      $region52: #{down_forward.1} parent=47 // pred_fallthru
        _
    $region48: #{down_forward.1} parent=5 // pred_fallthru
      _
  $region6: #{down_forward.1} parent=0 // loop_footer
    %s15 = sadd.s32 1, %s11
  $region7: #{down_forward.1} parent=0 // loop_footer_branch
    %10 = sbr.rel target = $region3
  $region8: #{down_forward.1} parent=0 // loop_exit
    _

</llo_original>
